<compile_context>
chip_gen: v7x
topology: tpu7x:2x2x1
jax: 0.10.0
libtpu: 0.0.40
codegen_flags: <defaults>
</compile_context>

<pallas_src>
import jax
import jax.numpy as jnp
from jax.experimental import pallas as pl
from jax.experimental.pallas import tpu as pltpu

D_IN, D1, D2, D3_PAD, D_OUT_PAD = 2304, 256, 128, 128, 128
D3, D_OUT = 32, 2  # true (unpadded) tail widths


def _round_up(n, m):
    return ((n + m - 1) // m) * m


def _mlp_kernel(x_ref, w1_ref, b1_ref, w2_ref, b2_ref,
                w3_ref, b3_ref, w4_ref, b4_ref, out_ref):
    # x arrives in source f32; cast to bf16 in VMEM just before the first MXU dot.
    x = x_ref[...].astype(jnp.bfloat16)
    # classifier: Linear(2304, 256) + ReLU   (bf16 operands, f32 accumulation)
    h = jnp.dot(x, w1_ref[...], preferred_element_type=jnp.float32)
    h = jnp.maximum(h + b1_ref[...], 0.0).astype(jnp.bfloat16)
    # classifier: Linear(256, 128) + ReLU
    h = jnp.dot(h, w2_ref[...], preferred_element_type=jnp.float32)
    h = jnp.maximum(h + b2_ref[...], 0.0).astype(jnp.bfloat16)
    # last: Linear(128, 32) + ReLU   (padded to 128 output lanes; pad cols stay 0)
    h = jnp.dot(h, w3_ref[...], preferred_element_type=jnp.float32)
    h = jnp.maximum(h + b3_ref[...], 0.0).astype(jnp.bfloat16)
    # last: Linear(32, 2)            (padded to 128 output lanes; pad cols stay 0)
    y = jnp.dot(h, w4_ref[...], preferred_element_type=jnp.float32) + b4_ref[...]
    # Lane-dense (TB, 128) bf16 writeback — unmasked vst, half the f32 bytes.
    out_ref[...] = y.astype(out_ref.dtype)


def init_params(key):
    """Deterministic init mimicking PyTorch nn.Linear default (U(-1/sqrt(fan_in), +)).

    Weights are stored pre-transposed as (in_features, out_features) so the kernel
    computes y = x @ W + b (identical to PyTorch's y = x @ W^T + b)."""
    dims = [(D_IN, D1), (D1, D2), (D2, D3), (D3, D_OUT)]
    params = []
    for i, (fin, fout) in enumerate(dims):
        kw, kb = jax.random.split(jax.random.fold_in(key, i))
        bound = 1.0 / jnp.sqrt(fin)
        w = jax.random.uniform(kw, (fin, fout), jnp.float32, -bound, bound)
        b = jax.random.uniform(kb, (1, fout), jnp.float32, -bound, bound)
        params.append((w, b))
    return params


def prepare_params(params):
    """Cast weights to bf16 and zero-pad the narrow tail layers to 128 lanes."""
    (w1, b1), (w2, b2), (w3, b3), (w4, b4) = params

    def pad2(a, rows, cols):
        return jnp.pad(a, ((0, rows - a.shape[0]), (0, cols - a.shape[1])))

    w3p = pad2(w3, D2, D3_PAD)          # (128, 32)  -> (128, 128)
    b3p = pad2(b3, 1, D3_PAD)           # (1, 32)    -> (1, 128)
    w4p = pad2(w4, D3_PAD, D_OUT_PAD)   # (32, 2)    -> (128, 128)
    b4p = pad2(b4, 1, D_OUT_PAD)        # (1, 2)     -> (1, 128)

    bf16 = jnp.bfloat16
    return ((w1.astype(bf16), b1.astype(jnp.float32)),
            (w2.astype(bf16), b2.astype(jnp.float32)),
            (w3p.astype(bf16), b3p.astype(jnp.float32)),
            (w4p.astype(bf16), b4p.astype(jnp.float32)))


def baseline2_forward(x_nchw, prepped_params, age=None, sexe=None):
    """x_nchw: (B, 1, 48, 48) -> (B, 2) float32.  age/sexe unused (SEXE=AGE=False)."""
    B = x_nchw.shape[0]
    # inference_model stand-in (identity) + nn.Flatten(); the contiguous reshape is a
    # metadata-only bitcast (no HBM copy).  x stays f32; cast happens inside the kernel.
    x_flat = x_nchw.reshape(B, D_IN)

    # Batch tile: 1024 rows amortizes per-grid-step overhead; fits VMEM on v5e/v6e/v7x.
    TB = min(1024, _round_up(B, 8))

    (w1, b1), (w2, b2), (w3, b3), (w4, b4) = prepped_params

    def resident(a):
        # Weight/bias blocks: same block index every grid step -> fetched once,
        # VMEM-resident across the batch loop.
        return pl.BlockSpec(a.shape, lambda i: (0, 0))

    out = pl.pallas_call(
        _mlp_kernel,
        out_shape=jax.ShapeDtypeStruct((B, D_OUT_PAD), jnp.bfloat16),
        grid=(pl.cdiv(B, TB),),   # ragged last block masked by Pallas (no jnp.pad pass)
        in_specs=[
            pl.BlockSpec((TB, D_IN), lambda i: (i, 0)),   # x tile (double-buffered, f32)
            resident(w1), resident(b1),
            resident(w2), resident(b2),
            resident(w3), resident(b3),
            resident(w4), resident(b4),
        ],
        out_specs=pl.BlockSpec((TB, D_OUT_PAD), lambda i: (i, 0)),  # lane-dense bf16 out
        compiler_params=pltpu.CompilerParams(
            dimension_semantics=("parallel",),            # dual-TC sharding on v7x
            vmem_limit_bytes=48 * 1024 * 1024,            # headroom vs. 64 MiB on v7x
        ),
    )(x_flat, w1, b1, w2, b2, w3, b3, w4, b4)

    return out[:, :D_OUT].astype(jnp.float32)


def reference_forward(x_nchw, prepped_params):
    """Pure-JAX reference replicating the kernel's bf16-weight / f32-accum scheme."""
    (w1, b1), (w2, b2), (w3, b3), (w4, b4) = prepped_params
    f32, bf16 = jnp.float32, jnp.bfloat16
    h = x_nchw.reshape(x_nchw.shape[0], -1).astype(bf16).astype(f32)
    h = jnp.maximum(h @ w1.astype(f32) + b1, 0.0).astype(bf16).astype(f32)
    h = jnp.maximum(h @ w2.astype(f32) + b2, 0.0).astype(bf16).astype(f32)
    h = jnp.maximum(h @ w3.astype(f32) + b3, 0.0).astype(bf16).astype(f32)
    y = (h @ w4.astype(f32) + b4).astype(bf16).astype(f32)   # mirror bf16 writeback
    return y[:, :D_OUT]


if __name__ == "__main__":
    key = jax.random.PRNGKey(0)
    kx, kp = jax.random.split(key)

    B = 2
    x = jax.random.normal(kx, (B, 1, 48, 48), jnp.float32)   # NCHW input to Baseline_2
    # age / sexe are unused in the default (SEXE=False, AGE=False) configuration.
    params = init_params(kp)
    prepped = prepare_params(params)

    out = baseline2_forward(x, prepped)
    out = jax.block_until_ready(out)

    ref = reference_forward(x, prepped)
    assert out.shape == (B, 2), out.shape
    assert jnp.allclose(out, ref, atol=2e-2, rtol=2e-2), float(jnp.max(jnp.abs(out - ref)))

    print("KERNEL_OK")
</pallas_src>

<mosaic_0001>
module attributes {stable_mosaic.version = 11 : i64} {
  func.func @_mlp_kernel(%arg0: i32, %arg1: memref<8x2304xf32, #tpu.memory_space<vmem>>, %arg2: memref<2304x256xbf16, #tpu.memory_space<vmem>>, %arg3: memref<1x256xf32, #tpu.memory_space<vmem>>, %arg4: memref<256x128xbf16, #tpu.memory_space<vmem>>, %arg5: memref<1x128xf32, #tpu.memory_space<vmem>>, %arg6: memref<128x128xbf16, #tpu.memory_space<vmem>>, %arg7: memref<1x128xf32, #tpu.memory_space<vmem>>, %arg8: memref<128x128xbf16, #tpu.memory_space<vmem>>, %arg9: memref<1x128xf32, #tpu.memory_space<vmem>>, %arg10: memref<8x128xbf16, #tpu.memory_space<vmem>>) attributes {dimension_semantics = [#tpu.dimension_semantics<parallel>], iteration_bounds = array<i64: 1>, scalar_prefetch = 0 : i64, scratch_operands = 0 : i64, tpu.core_type = #tpu.core_type<tc>, window_params = [{transform_indices = @transform_0, window_bounds = array<i64: 8, 2304>}, {pipeline_mode = #tpu.pipeline_mode<synchronous>, transform_indices = @transform_1, window_bounds = array<i64: 2304, 256>}, {pipeline_mode = #tpu.pipeline_mode<synchronous>, transform_indices = @transform_2, window_bounds = array<i64: 1, 256>}, {pipeline_mode = #tpu.pipeline_mode<synchronous>, transform_indices = @transform_3, window_bounds = array<i64: 256, 128>}, {pipeline_mode = #tpu.pipeline_mode<synchronous>, transform_indices = @transform_4, window_bounds = array<i64: 1, 128>}, {pipeline_mode = #tpu.pipeline_mode<synchronous>, transform_indices = @transform_5, window_bounds = array<i64: 128, 128>}, {pipeline_mode = #tpu.pipeline_mode<synchronous>, transform_indices = @transform_6, window_bounds = array<i64: 1, 128>}, {pipeline_mode = #tpu.pipeline_mode<synchronous>, transform_indices = @transform_7, window_bounds = array<i64: 128, 128>}, {pipeline_mode = #tpu.pipeline_mode<synchronous>, transform_indices = @transform_8, window_bounds = array<i64: 1, 128>}, {transform_indices = @transform_9, window_bounds = array<i64: 8, 128>}]} {
    %c0 = arith.constant 0 : index
    %c0_0 = arith.constant 0 : index
    %0 = vector.load %arg1[%c0, %c0_0] : memref<8x2304xf32, #tpu.memory_space<vmem>>, vector<8x2304xf32>
    %1 = arith.truncf %0 : vector<8x2304xf32> to vector<8x2304xbf16>
    %c0_1 = arith.constant 0 : index
    %c0_2 = arith.constant 0 : index
    %2 = vector.load %arg2[%c0_1, %c0_2] : memref<2304x256xbf16, #tpu.memory_space<vmem>>, vector<2304x256xbf16>
    %cst = arith.constant dense<0.000000e+00> : vector<8x256xf32>
    %3 = tpu.matmul %1, %2, %cst {dimension_numbers = #tpu.dot_dimension_numbers<[1], [0], [0], [1], [0, 0, 1, 1], [], []>} : vector<8x2304xbf16>, vector<2304x256xbf16>, vector<8x256xf32> -> vector<8x256xf32>
    %c0_3 = arith.constant 0 : index
    %c0_4 = arith.constant 0 : index
    %4 = vector.load %arg3[%c0_3, %c0_4] : memref<1x256xf32, #tpu.memory_space<vmem>>, vector<1x256xf32>
    %5 = vector.broadcast %4 : vector<1x256xf32> to vector<8x256xf32>
    %6 = arith.addf %3, %5 : vector<8x256xf32>
    %cst_5 = arith.constant 0.000000e+00 : f32
    %7 = vector.broadcast %cst_5 : f32 to vector<8x256xf32>
    %8 = arith.maximumf %6, %7 : vector<8x256xf32>
    %9 = arith.truncf %8 : vector<8x256xf32> to vector<8x256xbf16>
    %c0_6 = arith.constant 0 : index
    %c0_7 = arith.constant 0 : index
    %10 = vector.load %arg4[%c0_6, %c0_7] : memref<256x128xbf16, #tpu.memory_space<vmem>>, vector<256x128xbf16>
    %cst_8 = arith.constant dense<0.000000e+00> : vector<8x128xf32>
    %11 = tpu.matmul %9, %10, %cst_8 {dimension_numbers = #tpu.dot_dimension_numbers<[1], [0], [0], [1], [0, 0, 1, 1], [], []>} : vector<8x256xbf16>, vector<256x128xbf16>, vector<8x128xf32> -> vector<8x128xf32>
    %c0_9 = arith.constant 0 : index
    %c0_10 = arith.constant 0 : index
    %12 = vector.load %arg5[%c0_9, %c0_10] : memref<1x128xf32, #tpu.memory_space<vmem>>, vector<1x128xf32>
    %13 = vector.broadcast %12 : vector<1x128xf32> to vector<8x128xf32>
    %14 = arith.addf %11, %13 : vector<8x128xf32>
    %cst_11 = arith.constant 0.000000e+00 : f32
    %15 = vector.broadcast %cst_11 : f32 to vector<8x128xf32>
    %16 = arith.maximumf %14, %15 : vector<8x128xf32>
    %17 = arith.truncf %16 : vector<8x128xf32> to vector<8x128xbf16>
    %c0_12 = arith.constant 0 : index
    %c0_13 = arith.constant 0 : index
    %18 = vector.load %arg6[%c0_12, %c0_13] : memref<128x128xbf16, #tpu.memory_space<vmem>>, vector<128x128xbf16>
    %cst_14 = arith.constant dense<0.000000e+00> : vector<8x128xf32>
    %19 = tpu.matmul %17, %18, %cst_14 {dimension_numbers = #tpu.dot_dimension_numbers<[1], [0], [0], [1], [0, 0, 1, 1], [], []>} : vector<8x128xbf16>, vector<128x128xbf16>, vector<8x128xf32> -> vector<8x128xf32>
    %c0_15 = arith.constant 0 : index
    %c0_16 = arith.constant 0 : index
    %20 = vector.load %arg7[%c0_15, %c0_16] : memref<1x128xf32, #tpu.memory_space<vmem>>, vector<1x128xf32>
    %21 = vector.broadcast %20 : vector<1x128xf32> to vector<8x128xf32>
    %22 = arith.addf %19, %21 : vector<8x128xf32>
    %cst_17 = arith.constant 0.000000e+00 : f32
    %23 = vector.broadcast %cst_17 : f32 to vector<8x128xf32>
    %24 = arith.maximumf %22, %23 : vector<8x128xf32>
    %25 = arith.truncf %24 : vector<8x128xf32> to vector<8x128xbf16>
    %c0_18 = arith.constant 0 : index
    %c0_19 = arith.constant 0 : index
    %26 = vector.load %arg8[%c0_18, %c0_19] : memref<128x128xbf16, #tpu.memory_space<vmem>>, vector<128x128xbf16>
    %cst_20 = arith.constant dense<0.000000e+00> : vector<8x128xf32>
    %27 = tpu.matmul %25, %26, %cst_20 {dimension_numbers = #tpu.dot_dimension_numbers<[1], [0], [0], [1], [0, 0, 1, 1], [], []>} : vector<8x128xbf16>, vector<128x128xbf16>, vector<8x128xf32> -> vector<8x128xf32>
    %c0_21 = arith.constant 0 : index
    %c0_22 = arith.constant 0 : index
    %28 = vector.load %arg9[%c0_21, %c0_22] : memref<1x128xf32, #tpu.memory_space<vmem>>, vector<1x128xf32>
    %29 = vector.broadcast %28 : vector<1x128xf32> to vector<8x128xf32>
    %30 = arith.addf %27, %29 : vector<8x128xf32>
    %31 = arith.truncf %30 : vector<8x128xf32> to vector<8x128xbf16>
    %c0_23 = arith.constant 0 : index
    %c0_24 = arith.constant 0 : index
    %32 = vector.load %arg10[%c0_23, %c0_24] : memref<8x128xbf16, #tpu.memory_space<vmem>>, vector<8x128xbf16>
    tpu.vector_store %arg10[%c0_23, %c0_24], %31 {strides = array<i32>} : memref<8x128xbf16, #tpu.memory_space<vmem>>, vector<8x128xbf16>,
    return
  }
  func.func @transform_0(%arg0: i32) -> (i32, i32) {
    %c0_i32 = arith.constant 0 : i32
    %c0_i32_0 = arith.constant 0 : i32
    return %arg0, %c0_i32 : i32, i32
  }
  func.func @transform_1(%arg0: i32) -> (i32, i32) {
    %c0_i32 = arith.constant 0 : i32
    %c0_i32_0 = arith.constant 0 : i32
    %c0_i32_1 = arith.constant 0 : i32
    return %c0_i32, %c0_i32_0 : i32, i32
  }
  func.func @transform_2(%arg0: i32) -> (i32, i32) {
    %c0_i32 = arith.constant 0 : i32
    %c0_i32_0 = arith.constant 0 : i32
    %c0_i32_1 = arith.constant 0 : i32
    return %c0_i32, %c0_i32_0 : i32, i32
  }
  func.func @transform_3(%arg0: i32) -> (i32, i32) {
    %c0_i32 = arith.constant 0 : i32
    %c0_i32_0 = arith.constant 0 : i32
    %c0_i32_1 = arith.constant 0 : i32
    return %c0_i32, %c0_i32_0 : i32, i32
  }
  func.func @transform_4(%arg0: i32) -> (i32, i32) {
    %c0_i32 = arith.constant 0 : i32
    %c0_i32_0 = arith.constant 0 : i32
    %c0_i32_1 = arith.constant 0 : i32
    return %c0_i32, %c0_i32_0 : i32, i32
  }
  func.func @transform_5(%arg0: i32) -> (i32, i32) {
    %c0_i32 = arith.constant 0 : i32
    %c0_i32_0 = arith.constant 0 : i32
    %c0_i32_1 = arith.constant 0 : i32
    return %c0_i32, %c0_i32_0 : i32, i32
  }
  func.func @transform_6(%arg0: i32) -> (i32, i32) {
    %c0_i32 = arith.constant 0 : i32
    %c0_i32_0 = arith.constant 0 : i32
    %c0_i32_1 = arith.constant 0 : i32
    return %c0_i32, %c0_i32_0 : i32, i32
  }
  func.func @transform_7(%arg0: i32) -> (i32, i32) {
    %c0_i32 = arith.constant 0 : i32
    %c0_i32_0 = arith.constant 0 : i32
    %c0_i32_1 = arith.constant 0 : i32
    return %c0_i32, %c0_i32_0 : i32, i32
  }
  func.func @transform_8(%arg0: i32) -> (i32, i32) {
    %c0_i32 = arith.constant 0 : i32
    %c0_i32_0 = arith.constant 0 : i32
    %c0_i32_1 = arith.constant 0 : i32
    return %c0_i32, %c0_i32_0 : i32, i32
  }
  func.func @transform_9(%arg0: i32) -> (i32, i32) {
    %c0_i32 = arith.constant 0 : i32
    %c0_i32_0 = arith.constant 0 : i32
    return %arg0, %c0_i32 : i32, i32
  }
}

</mosaic_0001>

<llo_original>
// kernel: tpu_custom_call.1
$region0: #{tpu_custom_call.1}
  #allocation0 [shape = 'u32[]', space=smem, size = 0x4, offset = 0x4, fixed_abs, tag = 'smem constant byte address 0x4 - core index']
  #allocation1 [shape = 'u32[144,128]{1,0:T(1,128)}', space=vmem, size = 0x12000, scoped, tag = 'internal scratch']
  %s0 = inlined_call_operand.hbm [shape: f32[2,2304], index: 0, kind: input, shape index: {}]
  %s1 = inlined_call_operand.hbm [shape: bf16[2304,256], index: 1, kind: input, shape index: {}]
  %s2 = inlined_call_operand.hbm [shape: f32[1,256], index: 2, kind: input, shape index: {}]
  %s3 = inlined_call_operand.hbm [shape: bf16[256,128], index: 3, kind: input, shape index: {}]
  %s4 = inlined_call_operand.hbm [shape: f32[1,128], index: 4, kind: input, shape index: {}]
  %s5 = inlined_call_operand.hbm [shape: bf16[128,128], index: 5, kind: input, shape index: {}]
  %s6 = inlined_call_operand.hbm [shape: f32[1,128], index: 6, kind: input, shape index: {}]
  %s7 = inlined_call_operand.hbm [shape: bf16[128,128], index: 7, kind: input, shape index: {}]
  %s8 = inlined_call_operand.hbm [shape: f32[1,128], index: 8, kind: input, shape index: {}]
  %s9 = inlined_call_operand.hbm [shape: bf16[2,128], index: 9, kind: output, shape index: {}]
  %s10 = sld [smem:[#allocation0]]
  $region82: #{tpu_custom_call.1} parent=0
    _
  %s12 = ssub.s32 1, %s10
  %s13 = scalar_select 0, %s12, %s10
  $region1: #{tpu_custom_call.1} parent=0
    #allocation2 [shape = 'u8[73728]{0}', space=vmem, size = 0x12000, scoped, tag = 'input window, operand 0, single buffered']
    #allocation3 [shape = 's32[1]{0}', space=sflag, size = 0x4, scoped, tag = 'scoped memory for tpu_custom_call.1']
    #allocation4 [shape = 's32[1]{0}', space=sflag, size = 0x4, scoped, tag = 'scoped memory for tpu_custom_call.1']
    #allocation5 [shape = 'u8[1179648]{0}', space=vmem, size = 0x120000, scoped, tag = 'input window, operand 1, single buffered']
    #allocation6 [shape = 's32[1]{0}', space=sflag, size = 0x4, scoped, tag = 'scoped memory for tpu_custom_call.1']
    #allocation7 [shape = 'u8[1024]{0}', space=vmem, size = 0x400, scoped, tag = 'input window, operand 2, single buffered']
    #allocation8 [shape = 'u8[65536]{0}', space=vmem, size = 0x10000, scoped, tag = 'input window, operand 3, single buffered']
    #allocation9 [shape = 's32[1]{0}', space=sflag, size = 0x4, scoped, tag = 'scoped memory for tpu_custom_call.1']
    #allocation10 [shape = 'u8[512]{0}', space=vmem, size = 0x400, scoped, tag = 'input window, operand 4, single buffered']
    #allocation11 [shape = 'u8[32768]{0}', space=vmem, size = 0x8000, scoped, tag = 'input window, operand 5, single buffered']
    #allocation12 [shape = 's32[1]{0}', space=sflag, size = 0x4, scoped, tag = 'scoped memory for tpu_custom_call.1']
    #allocation13 [shape = 'u8[512]{0}', space=vmem, size = 0x400, scoped, tag = 'input window, operand 6, single buffered']
    #allocation14 [shape = 'u8[32768]{0}', space=vmem, size = 0x8000, scoped, tag = 'input window, operand 7, single buffered']
    #allocation15 [shape = 's32[1]{0}', space=sflag, size = 0x4, scoped, tag = 'scoped memory for tpu_custom_call.1']
    #allocation16 [shape = 'u8[512]{0}', space=vmem, size = 0x400, scoped, tag = 'input window, operand 8, single buffered']
    #allocation17 [shape = 'u8[2048]{0}', space=vmem, size = 0x800, scoped, tag = 'output window, operand 0, single buffered']
    %14 = vsyncpa [#allocation3], 0
    %15 = vsyncpa [#allocation6], 0
    %16 = vsyncpa [#allocation9], 0
    %17 = vsyncpa [#allocation12], 0
    %18 = vsyncpa [#allocation15], 0
    %19 = vsyncpa [#allocation4], 0
    // Predicated region
    $region2: #{tpu_custom_call.1} parent=1 // pred_check
      _
    $region3: #{tpu_custom_call.1} parent=1 // pred_check_branch
      %21 = sbr.rel (0) target = $region5
    $region4: #{tpu_custom_call.1} parent=1 // pred_region
      %s23 = ssub.s32 2304, 576
      %24 = vsyncadd [#allocation3], %s23
      %s25 = sshll.u32 [#allocation2], 4
      %s26 = int_to_ptr.vmem [resolvable:$true] %s25
      %31 = dma.hbm_to_vmem [thread:$0]  %s0, 576, %s26, [#allocation3], 576, 576, 36
    $region5: #{tpu_custom_call.1} parent=1 // pred_fallthru
      _
    // Predicated region
    $region6: #{tpu_custom_call.1} parent=1 // pred_check
      _
    $region7: #{tpu_custom_call.1} parent=1 // pred_check_branch
      %33 = sbr.rel (0) target = $region9
    $region8: #{tpu_custom_call.1} parent=1 // pred_region
      %s35 = ssub.s32 36864, 36864
      %36 = vsyncadd [#allocation6], %s35
      %s37 = sshll.u32 [#allocation5], 4
      %s38 = int_to_ptr.vmem [resolvable:$true] %s37
      %43 = dma.hbm_to_vmem [thread:$0]  %s1, 36864, %s38, [#allocation6], 128, 128, 8
    $region9: #{tpu_custom_call.1} parent=1 // pred_fallthru
      _
    // Predicated region
    $region10: #{tpu_custom_call.1} parent=1 // pred_check
      _
    $region11: #{tpu_custom_call.1} parent=1 // pred_check_branch
      %45 = sbr.rel (0) target = $region13
    $region12: #{tpu_custom_call.1} parent=1 // pred_region
      %s47 = ssub.s32 32, 32
      %48 = vsyncadd [#allocation6], %s47
      %s50 = sshll.u32 [#allocation7], 4
      %s51 = int_to_ptr.vmem [resolvable:$true] %s50
      %53 = dma.hbm_to_vmem [thread:$0]  %s2, 32, %s51, [#allocation6]
    $region13: #{tpu_custom_call.1} parent=1 // pred_fallthru
      _
    // Predicated region
    $region14: #{tpu_custom_call.1} parent=1 // pred_check
      _
    $region15: #{tpu_custom_call.1} parent=1 // pred_check_branch
      %55 = sbr.rel (0) target = $region17
    $region16: #{tpu_custom_call.1} parent=1 // pred_region
      %s57 = ssub.s32 2048, 2048
      %58 = vsyncadd [#allocation9], %s57
      %s59 = sshll.u32 [#allocation8], 4
      %s60 = int_to_ptr.vmem [resolvable:$true] %s59
      %65 = dma.hbm_to_vmem [thread:$0]  %s3, 2048, %s60, [#allocation9], 64, 64, 4
    $region17: #{tpu_custom_call.1} parent=1 // pred_fallthru
      _
    // Predicated region
    $region18: #{tpu_custom_call.1} parent=1 // pred_check
      _
    $region19: #{tpu_custom_call.1} parent=1 // pred_check_branch
      %67 = sbr.rel (0) target = $region21
    $region20: #{tpu_custom_call.1} parent=1 // pred_region
      %s69 = ssub.s32 16, 16
      %70 = vsyncadd [#allocation9], %s69
      %s72 = sshll.u32 [#allocation10], 4
      %s73 = int_to_ptr.vmem [resolvable:$true] %s72
      %75 = dma.hbm_to_vmem [thread:$0]  %s4, 16, %s73, [#allocation9]
    $region21: #{tpu_custom_call.1} parent=1 // pred_fallthru
      _
    // Predicated region
    $region22: #{tpu_custom_call.1} parent=1 // pred_check
      _
    $region23: #{tpu_custom_call.1} parent=1 // pred_check_branch
      %77 = sbr.rel (0) target = $region25
    $region24: #{tpu_custom_call.1} parent=1 // pred_region
      %s79 = ssub.s32 1024, 1024
      %80 = vsyncadd [#allocation12], %s79
      %s81 = sshll.u32 [#allocation11], 4
      %s82 = int_to_ptr.vmem [resolvable:$true] %s81
      %87 = dma.hbm_to_vmem [thread:$0]  %s5, 1024, %s82, [#allocation12], 64, 64, 4
    $region25: #{tpu_custom_call.1} parent=1 // pred_fallthru
      _
    // Predicated region
    $region26: #{tpu_custom_call.1} parent=1 // pred_check
      _
    $region27: #{tpu_custom_call.1} parent=1 // pred_check_branch
      %89 = sbr.rel (0) target = $region29
    $region28: #{tpu_custom_call.1} parent=1 // pred_region
      %s91 = ssub.s32 16, 16
      %92 = vsyncadd [#allocation12], %s91
      %s94 = sshll.u32 [#allocation13], 4
      %s95 = int_to_ptr.vmem [resolvable:$true] %s94
      %97 = dma.hbm_to_vmem [thread:$0]  %s6, 16, %s95, [#allocation12]
    $region29: #{tpu_custom_call.1} parent=1 // pred_fallthru
      _
    // Predicated region
    $region30: #{tpu_custom_call.1} parent=1 // pred_check
      _
    $region31: #{tpu_custom_call.1} parent=1 // pred_check_branch
      %99 = sbr.rel (0) target = $region33
    $region32: #{tpu_custom_call.1} parent=1 // pred_region
      %s101 = ssub.s32 1024, 1024
      %102 = vsyncadd [#allocation15], %s101
      %s103 = sshll.u32 [#allocation14], 4
      %s104 = int_to_ptr.vmem [resolvable:$true] %s103
      %109 = dma.hbm_to_vmem [thread:$0]  %s7, 1024, %s104, [#allocation15], 64, 64, 4
    $region33: #{tpu_custom_call.1} parent=1 // pred_fallthru
      _
    // Predicated region
    $region34: #{tpu_custom_call.1} parent=1 // pred_check
      _
    $region35: #{tpu_custom_call.1} parent=1 // pred_check_branch
      %111 = sbr.rel (0) target = $region37
    $region36: #{tpu_custom_call.1} parent=1 // pred_region
      %s113 = ssub.s32 16, 16
      %114 = vsyncadd [#allocation15], %s113
      %s116 = sshll.u32 [#allocation16], 4
      %s117 = int_to_ptr.vmem [resolvable:$true] %s116
      %119 = dma.hbm_to_vmem [thread:$0]  %s8, 16, %s117, [#allocation15]
    $region37: #{tpu_custom_call.1} parent=1 // pred_fallthru
      _
    // Predicated region
    $region38: #{tpu_custom_call.1} parent=1 // pred_check
      _
    $region39: #{tpu_custom_call.1} parent=1 // pred_check_branch
      %121 = sbr.rel (0) target = $region41
    $region40: #{tpu_custom_call.1} parent=1 // pred_region
      %122 = dma.done [#allocation3], 2304
    $region41: #{tpu_custom_call.1} parent=1 // pred_fallthru
      _
    // Predicated region
    $region42: #{tpu_custom_call.1} parent=1 // pred_check
      _
    $region43: #{tpu_custom_call.1} parent=1 // pred_check_branch
      %124 = sbr.rel (0) target = $region45
    $region44: #{tpu_custom_call.1} parent=1 // pred_region
      %125 = dma.done [#allocation6], 36864
    $region45: #{tpu_custom_call.1} parent=1 // pred_fallthru
      _
    // Predicated region
    $region46: #{tpu_custom_call.1} parent=1 // pred_check
      _
    $region47: #{tpu_custom_call.1} parent=1 // pred_check_branch
      %127 = sbr.rel (0) target = $region49
    $region48: #{tpu_custom_call.1} parent=1 // pred_region
      %128 = dma.done [#allocation6], 32
    $region49: #{tpu_custom_call.1} parent=1 // pred_fallthru
      _
    // Predicated region
    $region50: #{tpu_custom_call.1} parent=1 // pred_check
      _
    $region51: #{tpu_custom_call.1} parent=1 // pred_check_branch
      %130 = sbr.rel (0) target = $region53
    $region52: #{tpu_custom_call.1} parent=1 // pred_region
      %131 = dma.done [#allocation9], 2048
    $region53: #{tpu_custom_call.1} parent=1 // pred_fallthru
      _
    // Predicated region
    $region54: #{tpu_custom_call.1} parent=1 // pred_check
      _
    $region55: #{tpu_custom_call.1} parent=1 // pred_check_branch
      %133 = sbr.rel (0) target = $region57
    $region56: #{tpu_custom_call.1} parent=1 // pred_region
      %134 = dma.done [#allocation9], 16
    $region57: #{tpu_custom_call.1} parent=1 // pred_fallthru
      _
    // Predicated region
    $region58: #{tpu_custom_call.1} parent=1 // pred_check
      _
    $region59: #{tpu_custom_call.1} parent=1 // pred_check_branch
      %136 = sbr.rel (0) target = $region61
    $region60: #{tpu_custom_call.1} parent=1 // pred_region
      %137 = dma.done [#allocation12], 1024
    $region61: #{tpu_custom_call.1} parent=1 // pred_fallthru
      _
    // Predicated region
    $region62: #{tpu_custom_call.1} parent=1 // pred_check
      _
    $region63: #{tpu_custom_call.1} parent=1 // pred_check_branch
      %139 = sbr.rel (0) target = $region65
    $region64: #{tpu_custom_call.1} parent=1 // pred_region
      %140 = dma.done [#allocation12], 16
    $region65: #{tpu_custom_call.1} parent=1 // pred_fallthru
      _
    // Predicated region
    $region66: #{tpu_custom_call.1} parent=1 // pred_check
      _
    $region67: #{tpu_custom_call.1} parent=1 // pred_check_branch
      %142 = sbr.rel (0) target = $region69
    $region68: #{tpu_custom_call.1} parent=1 // pred_region
      %143 = dma.done [#allocation15], 1024
    $region69: #{tpu_custom_call.1} parent=1 // pred_fallthru
      _
    // Predicated region
    $region70: #{tpu_custom_call.1} parent=1 // pred_check
      _
    $region71: #{tpu_custom_call.1} parent=1 // pred_check_branch
      %145 = sbr.rel (0) target = $region73
    $region72: #{tpu_custom_call.1} parent=1 // pred_region
      %146 = dma.done [#allocation15], 16
    $region73: #{tpu_custom_call.1} parent=1 // pred_fallthru
      _
    %v148 = vld [vmem:[#allocation2] sm:$0xff]
    %v149 = vld [vmem:[#allocation2 + $0x8] sm:$0xff]
    %v150 = vld [vmem:[#allocation2 + $0x10] sm:$0xff]
    %v151 = vld [vmem:[#allocation2 + $0x18] sm:$0xff]
    %v152 = vld [vmem:[#allocation2 + $0x20] sm:$0xf]
    %v153 = vld [vmem:[#allocation2 + $0x24] sm:$0xff]
    %v154 = vld [vmem:[#allocation2 + $0x2c] sm:$0xff]
    %v155 = vld [vmem:[#allocation2 + $0x34] sm:$0xff]
    %v156 = vld [vmem:[#allocation2 + $0x3c] sm:$0xff]
    %v157 = vld [vmem:[#allocation2 + $0x44] sm:$0xf]
    %v158 = vld [vmem:[#allocation2 + $0x48] sm:$0xff]
    %v159 = vld [vmem:[#allocation2 + $0x50] sm:$0xff]
    %v160 = vld [vmem:[#allocation2 + $0x58] sm:$0xff]
    %v161 = vld [vmem:[#allocation2 + $0x60] sm:$0xff]
    %v162 = vld [vmem:[#allocation2 + $0x68] sm:$0xf]
    %v163 = vld [vmem:[#allocation2 + $0x6c] sm:$0xff]
    %v164 = vld [vmem:[#allocation2 + $0x74] sm:$0xff]
    %v165 = vld [vmem:[#allocation2 + $0x7c] sm:$0xff]
    %v166 = vld [vmem:[#allocation2 + $0x84] sm:$0xff]
    %v167 = vld [vmem:[#allocation2 + $0x8c] sm:$0xf]
    %v188 = vcombine.low %v148, %v153
    %v189 = vcombine.high %v148, %v153
    %v190 = vcombine.low %v158, %v163
    %v191 = vcombine.high %v158, %v163
    %v193 = vunpack.c.l.s4 1983009808
    %v194 = vunpack.c.0.s8 %v193
    %v195 = vlaneseq
    %v196 = vshrl.u32 %v195, 7
    %v197 = vsub.s32 %v194, %v196
    %v198 = vrot.slane %v188, %v197
    %v200 = vunpack.c.l.s4 1983009808
    %v201 = vunpack.c.0.s8 %v200
    %v202 = vlaneseq
    %v203 = vshrl.u32 %v202, 7
    %v204 = vsub.s32 %v201, %v203
    %v205 = vrot.slane %v189, %v204
    %v207 = vunpack.c.l.s4 1983009808
    %v208 = vunpack.c.0.s8 %v207
    %v209 = vlaneseq
    %v210 = vshrl.u32 %v209, 7
    %v211 = vsub.s32 %v208, %v210
    %v212 = vrot.slane %v190, %v211
    %v214 = vunpack.c.l.s4 1983009808
    %v215 = vunpack.c.0.s8 %v214
    %v216 = vlaneseq
    %v217 = vshrl.u32 %v216, 7
    %v218 = vsub.s32 %v215, %v217
    %v219 = vrot.slane %v191, %v218
    %v220 = vcombine.low %v198, %v212
    %v221 = vcombine.high %v198, %v212
    %v222 = vcombine.low %v205, %v219
    %v223 = vcombine.high %v205, %v219
    %v224 = vcombine.low %v149, %v154
    %v225 = vcombine.high %v149, %v154
    %v226 = vcombine.low %v159, %v164
    %v227 = vcombine.high %v159, %v164
    %v229 = vunpack.c.l.s4 1983009808
    %v230 = vunpack.c.0.s8 %v229
    %v231 = vlaneseq
    %v232 = vshrl.u32 %v231, 7
    %v233 = vsub.s32 %v230, %v232
    %v234 = vrot.slane %v224, %v233
    %v236 = vunpack.c.l.s4 1983009808
    %v237 = vunpack.c.0.s8 %v236
    %v238 = vlaneseq
    %v239 = vshrl.u32 %v238, 7
    %v240 = vsub.s32 %v237, %v239
    %v241 = vrot.slane %v225, %v240
    %v243 = vunpack.c.l.s4 1983009808
    %v244 = vunpack.c.0.s8 %v243
    %v245 = vlaneseq
    %v246 = vshrl.u32 %v245, 7
    %v247 = vsub.s32 %v244, %v246
    %v248 = vrot.slane %v226, %v247
    %v250 = vunpack.c.l.s4 1983009808
    %v251 = vunpack.c.0.s8 %v250
    %v252 = vlaneseq
    %v253 = vshrl.u32 %v252, 7
    %v254 = vsub.s32 %v251, %v253
    %v255 = vrot.slane %v227, %v254
    %v256 = vcombine.low %v234, %v248
    %v257 = vcombine.high %v234, %v248
    %v258 = vcombine.low %v241, %v255
    %v259 = vcombine.high %v241, %v255
    %v260 = vcombine.low %v150, %v155
    %v261 = vcombine.high %v150, %v155
    %v262 = vcombine.low %v160, %v165
    %v263 = vcombine.high %v160, %v165
    %v265 = vunpack.c.l.s4 1983009808
    %v266 = vunpack.c.0.s8 %v265
    %v267 = vlaneseq
    %v268 = vshrl.u32 %v267, 7
    %v269 = vsub.s32 %v266, %v268
    %v270 = vrot.slane %v260, %v269
    %v272 = vunpack.c.l.s4 1983009808
    %v273 = vunpack.c.0.s8 %v272
    %v274 = vlaneseq
    %v275 = vshrl.u32 %v274, 7
    %v276 = vsub.s32 %v273, %v275
    %v277 = vrot.slane %v261, %v276
    %v279 = vunpack.c.l.s4 1983009808
    %v280 = vunpack.c.0.s8 %v279
    %v281 = vlaneseq
    %v282 = vshrl.u32 %v281, 7
    %v283 = vsub.s32 %v280, %v282
    %v284 = vrot.slane %v262, %v283
    %v286 = vunpack.c.l.s4 1983009808
    %v287 = vunpack.c.0.s8 %v286
    %v288 = vlaneseq
    %v289 = vshrl.u32 %v288, 7
    %v290 = vsub.s32 %v287, %v289
    %v291 = vrot.slane %v263, %v290
    %v292 = vcombine.low %v270, %v284
    %v293 = vcombine.high %v270, %v284
    %v294 = vcombine.low %v277, %v291
    %v295 = vcombine.high %v277, %v291
    %v296 = vcombine.low %v151, %v156
    %v297 = vcombine.high %v151, %v156
    %v298 = vcombine.low %v161, %v166
    %v299 = vcombine.high %v161, %v166
    %v301 = vunpack.c.l.s4 1983009808
    %v302 = vunpack.c.0.s8 %v301
    %v303 = vlaneseq
    %v304 = vshrl.u32 %v303, 7
    %v305 = vsub.s32 %v302, %v304
    %v306 = vrot.slane %v296, %v305
    %v308 = vunpack.c.l.s4 1983009808
    %v309 = vunpack.c.0.s8 %v308
    %v310 = vlaneseq
    %v311 = vshrl.u32 %v310, 7
    %v312 = vsub.s32 %v309, %v311
    %v313 = vrot.slane %v297, %v312
    %v315 = vunpack.c.l.s4 1983009808
    %v316 = vunpack.c.0.s8 %v315
    %v317 = vlaneseq
    %v318 = vshrl.u32 %v317, 7
    %v319 = vsub.s32 %v316, %v318
    %v320 = vrot.slane %v298, %v319
    %v322 = vunpack.c.l.s4 1983009808
    %v323 = vunpack.c.0.s8 %v322
    %v324 = vlaneseq
    %v325 = vshrl.u32 %v324, 7
    %v326 = vsub.s32 %v323, %v325
    %v327 = vrot.slane %v299, %v326
    %v328 = vcombine.low %v306, %v320
    %v329 = vcombine.high %v306, %v320
    %v330 = vcombine.low %v313, %v327
    %v331 = vcombine.high %v313, %v327
    %v332 = vcombine.low %v152, %v157
    %v333 = vcombine.low %v162, %v167
    %v335 = vunpack.c.l.s4 1983009808
    %v336 = vunpack.c.0.s8 %v335
    %v337 = vlaneseq
    %v338 = vshrl.u32 %v337, 7
    %v339 = vsub.s32 %v336, %v338
    %v340 = vrot.slane %v332, %v339
    %v342 = vunpack.c.l.s4 1983009808
    %v343 = vunpack.c.0.s8 %v342
    %v344 = vlaneseq
    %v345 = vshrl.u32 %v344, 7
    %v346 = vsub.s32 %v343, %v345
    %v347 = vrot.slane %v333, %v346
    %v348 = vcombine.low %v340, %v347
    %v349 = vcombine.high %v340, %v347
    %v368 = vpack.c.bf16 %v220, %v220
    %v369 = vpack.c.bf16 %v221, %v221
    %v370 = vpack.c.bf16 %v222, %v222
    %v371 = vpack.c.bf16 %v223, %v223
    %v372 = vpack.c.bf16 %v256, %v256
    %v373 = vpack.c.bf16 %v257, %v257
    %v374 = vpack.c.bf16 %v258, %v258
    %v375 = vpack.c.bf16 %v259, %v259
    %v376 = vpack.c.bf16 %v292, %v292
    %v377 = vpack.c.bf16 %v293, %v293
    %v378 = vpack.c.bf16 %v294, %v294
    %v379 = vpack.c.bf16 %v295, %v295
    %v380 = vpack.c.bf16 %v328, %v328
    %v381 = vpack.c.bf16 %v329, %v329
    %v382 = vpack.c.bf16 %v330, %v330
    %v383 = vpack.c.bf16 %v331, %v331
    %v384 = vpack.c.bf16 %v348, %v348
    %v385 = vpack.c.bf16 %v349, %v349
    %v386 = vld [vmem:[#allocation5] sm:$0xff]
    %v387 = vld [vmem:[#allocation5 + $0x8] sm:$0xff]
    %v388 = vld [vmem:[#allocation5 + $0x10] sm:$0xff]
    %v389 = vld [vmem:[#allocation5 + $0x18] sm:$0xff]
    %v390 = vld [vmem:[#allocation5 + $0x20] sm:$0xff]
    %v391 = vld [vmem:[#allocation5 + $0x28] sm:$0xff]
    %v392 = vld [vmem:[#allocation5 + $0x30] sm:$0xff]
    %v393 = vld [vmem:[#allocation5 + $0x38] sm:$0xff]
    %v394 = vld [vmem:[#allocation5 + $0x40] sm:$0xff]
    %v395 = vld [vmem:[#allocation5 + $0x48] sm:$0xff]
    %v396 = vld [vmem:[#allocation5 + $0x50] sm:$0xff]
    %v397 = vld [vmem:[#allocation5 + $0x58] sm:$0xff]
    %v398 = vld [vmem:[#allocation5 + $0x60] sm:$0xff]
    %v399 = vld [vmem:[#allocation5 + $0x68] sm:$0xff]
    %v400 = vld [vmem:[#allocation5 + $0x70] sm:$0xff]
    %v401 = vld [vmem:[#allocation5 + $0x78] sm:$0xff]
    %v402 = vld [vmem:[#allocation5 + $0x80] sm:$0xff]
    %v403 = vld [vmem:[#allocation5 + $0x88] sm:$0xff]
    %v404 = vld [vmem:[#allocation5 + $0x90] sm:$0xff]
    %v405 = vld [vmem:[#allocation5 + $0x98] sm:$0xff]
    %v406 = vld [vmem:[#allocation5 + $0xa0] sm:$0xff]
    %v407 = vld [vmem:[#allocation5 + $0xa8] sm:$0xff]
    %v408 = vld [vmem:[#allocation5 + $0xb0] sm:$0xff]
    %v409 = vld [vmem:[#allocation5 + $0xb8] sm:$0xff]
    %v410 = vld [vmem:[#allocation5 + $0xc0] sm:$0xff]
    %v411 = vld [vmem:[#allocation5 + $0xc8] sm:$0xff]
    %v412 = vld [vmem:[#allocation5 + $0xd0] sm:$0xff]
    %v413 = vld [vmem:[#allocation5 + $0xd8] sm:$0xff]
    %v414 = vld [vmem:[#allocation5 + $0xe0] sm:$0xff]
    %v415 = vld [vmem:[#allocation5 + $0xe8] sm:$0xff]
    %v416 = vld [vmem:[#allocation5 + $0xf0] sm:$0xff]
    %v417 = vld [vmem:[#allocation5 + $0xf8] sm:$0xff]
    %v418 = vld [vmem:[#allocation5 + $0x100] sm:$0xff]
    %v419 = vld [vmem:[#allocation5 + $0x108] sm:$0xff]
    %v420 = vld [vmem:[#allocation5 + $0x110] sm:$0xff]
    %v421 = vld [vmem:[#allocation5 + $0x118] sm:$0xff]
    %v422 = vld [vmem:[#allocation5 + $0x120] sm:$0xff]
    %v423 = vld [vmem:[#allocation5 + $0x128] sm:$0xff]
    %v424 = vld [vmem:[#allocation5 + $0x130] sm:$0xff]
    %v425 = vld [vmem:[#allocation5 + $0x138] sm:$0xff]
    %v426 = vld [vmem:[#allocation5 + $0x140] sm:$0xff]
    %v427 = vld [vmem:[#allocation5 + $0x148] sm:$0xff]
    %v428 = vld [vmem:[#allocation5 + $0x150] sm:$0xff]
    %v429 = vld [vmem:[#allocation5 + $0x158] sm:$0xff]
    %v430 = vld [vmem:[#allocation5 + $0x160] sm:$0xff]
    %v431 = vld [vmem:[#allocation5 + $0x168] sm:$0xff]
    %v432 = vld [vmem:[#allocation5 + $0x170] sm:$0xff]
    %v433 = vld [vmem:[#allocation5 + $0x178] sm:$0xff]
    %v434 = vld [vmem:[#allocation5 + $0x180] sm:$0xff]
    %v435 = vld [vmem:[#allocation5 + $0x188] sm:$0xff]
    %v436 = vld [vmem:[#allocation5 + $0x190] sm:$0xff]
    %v437 = vld [vmem:[#allocation5 + $0x198] sm:$0xff]
    %v438 = vld [vmem:[#allocation5 + $0x1a0] sm:$0xff]
    %v439 = vld [vmem:[#allocation5 + $0x1a8] sm:$0xff]
    %v440 = vld [vmem:[#allocation5 + $0x1b0] sm:$0xff]
    %v441 = vld [vmem:[#allocation5 + $0x1b8] sm:$0xff]
    %v442 = vld [vmem:[#allocation5 + $0x1c0] sm:$0xff]
    %v443 = vld [vmem:[#allocation5 + $0x1c8] sm:$0xff]
    %v444 = vld [vmem:[#allocation5 + $0x1d0] sm:$0xff]
    %v445 = vld [vmem:[#allocation5 + $0x1d8] sm:$0xff]
    %v446 = vld [vmem:[#allocation5 + $0x1e0] sm:$0xff]
    %v447 = vld [vmem:[#allocation5 + $0x1e8] sm:$0xff]
    %v448 = vld [vmem:[#allocation5 + $0x1f0] sm:$0xff]
    %v449 = vld [vmem:[#allocation5 + $0x1f8] sm:$0xff]
    %v450 = vld [vmem:[#allocation5 + $0x200] sm:$0xff]
    %v451 = vld [vmem:[#allocation5 + $0x208] sm:$0xff]
    %v452 = vld [vmem:[#allocation5 + $0x210] sm:$0xff]
    %v453 = vld [vmem:[#allocation5 + $0x218] sm:$0xff]
    %v454 = vld [vmem:[#allocation5 + $0x220] sm:$0xff]
    %v455 = vld [vmem:[#allocation5 + $0x228] sm:$0xff]
    %v456 = vld [vmem:[#allocation5 + $0x230] sm:$0xff]
    %v457 = vld [vmem:[#allocation5 + $0x238] sm:$0xff]
    %v458 = vld [vmem:[#allocation5 + $0x240] sm:$0xff]
    %v459 = vld [vmem:[#allocation5 + $0x248] sm:$0xff]
    %v460 = vld [vmem:[#allocation5 + $0x250] sm:$0xff]
    %v461 = vld [vmem:[#allocation5 + $0x258] sm:$0xff]
    %v462 = vld [vmem:[#allocation5 + $0x260] sm:$0xff]
    %v463 = vld [vmem:[#allocation5 + $0x268] sm:$0xff]
    %v464 = vld [vmem:[#allocation5 + $0x270] sm:$0xff]
    %v465 = vld [vmem:[#allocation5 + $0x278] sm:$0xff]
    %v466 = vld [vmem:[#allocation5 + $0x280] sm:$0xff]
    %v467 = vld [vmem:[#allocation5 + $0x288] sm:$0xff]
    %v468 = vld [vmem:[#allocation5 + $0x290] sm:$0xff]
    %v469 = vld [vmem:[#allocation5 + $0x298] sm:$0xff]
    %v470 = vld [vmem:[#allocation5 + $0x2a0] sm:$0xff]
    %v471 = vld [vmem:[#allocation5 + $0x2a8] sm:$0xff]
    %v472 = vld [vmem:[#allocation5 + $0x2b0] sm:$0xff]
    %v473 = vld [vmem:[#allocation5 + $0x2b8] sm:$0xff]
    %v474 = vld [vmem:[#allocation5 + $0x2c0] sm:$0xff]
    %v475 = vld [vmem:[#allocation5 + $0x2c8] sm:$0xff]
    %v476 = vld [vmem:[#allocation5 + $0x2d0] sm:$0xff]
    %v477 = vld [vmem:[#allocation5 + $0x2d8] sm:$0xff]
    %v478 = vld [vmem:[#allocation5 + $0x2e0] sm:$0xff]
    %v479 = vld [vmem:[#allocation5 + $0x2e8] sm:$0xff]
    %v480 = vld [vmem:[#allocation5 + $0x2f0] sm:$0xff]
    %v481 = vld [vmem:[#allocation5 + $0x2f8] sm:$0xff]
    %v482 = vld [vmem:[#allocation5 + $0x300] sm:$0xff]
    %v483 = vld [vmem:[#allocation5 + $0x308] sm:$0xff]
    %v484 = vld [vmem:[#allocation5 + $0x310] sm:$0xff]
    %v485 = vld [vmem:[#allocation5 + $0x318] sm:$0xff]
    %v486 = vld [vmem:[#allocation5 + $0x320] sm:$0xff]
    %v487 = vld [vmem:[#allocation5 + $0x328] sm:$0xff]
    %v488 = vld [vmem:[#allocation5 + $0x330] sm:$0xff]
    %v489 = vld [vmem:[#allocation5 + $0x338] sm:$0xff]
    %v490 = vld [vmem:[#allocation5 + $0x340] sm:$0xff]
    %v491 = vld [vmem:[#allocation5 + $0x348] sm:$0xff]
    %v492 = vld [vmem:[#allocation5 + $0x350] sm:$0xff]
    %v493 = vld [vmem:[#allocation5 + $0x358] sm:$0xff]
    %v494 = vld [vmem:[#allocation5 + $0x360] sm:$0xff]
    %v495 = vld [vmem:[#allocation5 + $0x368] sm:$0xff]
    %v496 = vld [vmem:[#allocation5 + $0x370] sm:$0xff]
    %v497 = vld [vmem:[#allocation5 + $0x378] sm:$0xff]
    %v498 = vld [vmem:[#allocation5 + $0x380] sm:$0xff]
    %v499 = vld [vmem:[#allocation5 + $0x388] sm:$0xff]
    %v500 = vld [vmem:[#allocation5 + $0x390] sm:$0xff]
    %v501 = vld [vmem:[#allocation5 + $0x398] sm:$0xff]
    %v502 = vld [vmem:[#allocation5 + $0x3a0] sm:$0xff]
    %v503 = vld [vmem:[#allocation5 + $0x3a8] sm:$0xff]
    %v504 = vld [vmem:[#allocation5 + $0x3b0] sm:$0xff]
    %v505 = vld [vmem:[#allocation5 + $0x3b8] sm:$0xff]
    %v506 = vld [vmem:[#allocation5 + $0x3c0] sm:$0xff]
    %v507 = vld [vmem:[#allocation5 + $0x3c8] sm:$0xff]
    %v508 = vld [vmem:[#allocation5 + $0x3d0] sm:$0xff]
    %v509 = vld [vmem:[#allocation5 + $0x3d8] sm:$0xff]
    %v510 = vld [vmem:[#allocation5 + $0x3e0] sm:$0xff]
    %v511 = vld [vmem:[#allocation5 + $0x3e8] sm:$0xff]
    %v512 = vld [vmem:[#allocation5 + $0x3f0] sm:$0xff]
    %v513 = vld [vmem:[#allocation5 + $0x3f8] sm:$0xff]
    %v514 = vld [vmem:[#allocation5 + $0x400] sm:$0xff]
    %v515 = vld [vmem:[#allocation5 + $0x408] sm:$0xff]
    %v516 = vld [vmem:[#allocation5 + $0x410] sm:$0xff]
    %v517 = vld [vmem:[#allocation5 + $0x418] sm:$0xff]
    %v518 = vld [vmem:[#allocation5 + $0x420] sm:$0xff]
    %v519 = vld [vmem:[#allocation5 + $0x428] sm:$0xff]
    %v520 = vld [vmem:[#allocation5 + $0x430] sm:$0xff]
    %v521 = vld [vmem:[#allocation5 + $0x438] sm:$0xff]
    %v522 = vld [vmem:[#allocation5 + $0x440] sm:$0xff]
    %v523 = vld [vmem:[#allocation5 + $0x448] sm:$0xff]
    %v524 = vld [vmem:[#allocation5 + $0x450] sm:$0xff]
    %v525 = vld [vmem:[#allocation5 + $0x458] sm:$0xff]
    %v526 = vld [vmem:[#allocation5 + $0x460] sm:$0xff]
    %v527 = vld [vmem:[#allocation5 + $0x468] sm:$0xff]
    %v528 = vld [vmem:[#allocation5 + $0x470] sm:$0xff]
    %v529 = vld [vmem:[#allocation5 + $0x478] sm:$0xff]
    %v530 = vld [vmem:[#allocation5 + $0x480] sm:$0xff]
    %v531 = vld [vmem:[#allocation5 + $0x488] sm:$0xff]
    %v532 = vld [vmem:[#allocation5 + $0x490] sm:$0xff]
    %v533 = vld [vmem:[#allocation5 + $0x498] sm:$0xff]
    %v534 = vld [vmem:[#allocation5 + $0x4a0] sm:$0xff]
    %v535 = vld [vmem:[#allocation5 + $0x4a8] sm:$0xff]
    %v536 = vld [vmem:[#allocation5 + $0x4b0] sm:$0xff]
    %v537 = vld [vmem:[#allocation5 + $0x4b8] sm:$0xff]
    %v538 = vld [vmem:[#allocation5 + $0x4c0] sm:$0xff]
    %v539 = vld [vmem:[#allocation5 + $0x4c8] sm:$0xff]
    %v540 = vld [vmem:[#allocation5 + $0x4d0] sm:$0xff]
    %v541 = vld [vmem:[#allocation5 + $0x4d8] sm:$0xff]
    %v542 = vld [vmem:[#allocation5 + $0x4e0] sm:$0xff]
    %v543 = vld [vmem:[#allocation5 + $0x4e8] sm:$0xff]
    %v544 = vld [vmem:[#allocation5 + $0x4f0] sm:$0xff]
    %v545 = vld [vmem:[#allocation5 + $0x4f8] sm:$0xff]
    %v546 = vld [vmem:[#allocation5 + $0x500] sm:$0xff]
    %v547 = vld [vmem:[#allocation5 + $0x508] sm:$0xff]
    %v548 = vld [vmem:[#allocation5 + $0x510] sm:$0xff]
    %v549 = vld [vmem:[#allocation5 + $0x518] sm:$0xff]
    %v550 = vld [vmem:[#allocation5 + $0x520] sm:$0xff]
    %v551 = vld [vmem:[#allocation5 + $0x528] sm:$0xff]
    %v552 = vld [vmem:[#allocation5 + $0x530] sm:$0xff]
    %v553 = vld [vmem:[#allocation5 + $0x538] sm:$0xff]
    %v554 = vld [vmem:[#allocation5 + $0x540] sm:$0xff]
    %v555 = vld [vmem:[#allocation5 + $0x548] sm:$0xff]
    %v556 = vld [vmem:[#allocation5 + $0x550] sm:$0xff]
    %v557 = vld [vmem:[#allocation5 + $0x558] sm:$0xff]
    %v558 = vld [vmem:[#allocation5 + $0x560] sm:$0xff]
    %v559 = vld [vmem:[#allocation5 + $0x568] sm:$0xff]
    %v560 = vld [vmem:[#allocation5 + $0x570] sm:$0xff]
    %v561 = vld [vmem:[#allocation5 + $0x578] sm:$0xff]
    %v562 = vld [vmem:[#allocation5 + $0x580] sm:$0xff]
    %v563 = vld [vmem:[#allocation5 + $0x588] sm:$0xff]
    %v564 = vld [vmem:[#allocation5 + $0x590] sm:$0xff]
    %v565 = vld [vmem:[#allocation5 + $0x598] sm:$0xff]
    %v566 = vld [vmem:[#allocation5 + $0x5a0] sm:$0xff]
    %v567 = vld [vmem:[#allocation5 + $0x5a8] sm:$0xff]
    %v568 = vld [vmem:[#allocation5 + $0x5b0] sm:$0xff]
    %v569 = vld [vmem:[#allocation5 + $0x5b8] sm:$0xff]
    %v570 = vld [vmem:[#allocation5 + $0x5c0] sm:$0xff]
    %v571 = vld [vmem:[#allocation5 + $0x5c8] sm:$0xff]
    %v572 = vld [vmem:[#allocation5 + $0x5d0] sm:$0xff]
    %v573 = vld [vmem:[#allocation5 + $0x5d8] sm:$0xff]
    %v574 = vld [vmem:[#allocation5 + $0x5e0] sm:$0xff]
    %v575 = vld [vmem:[#allocation5 + $0x5e8] sm:$0xff]
    %v576 = vld [vmem:[#allocation5 + $0x5f0] sm:$0xff]
    %v577 = vld [vmem:[#allocation5 + $0x5f8] sm:$0xff]
    %v578 = vld [vmem:[#allocation5 + $0x600] sm:$0xff]
    %v579 = vld [vmem:[#allocation5 + $0x608] sm:$0xff]
    %v580 = vld [vmem:[#allocation5 + $0x610] sm:$0xff]
    %v581 = vld [vmem:[#allocation5 + $0x618] sm:$0xff]
    %v582 = vld [vmem:[#allocation5 + $0x620] sm:$0xff]
    %v583 = vld [vmem:[#allocation5 + $0x628] sm:$0xff]
    %v584 = vld [vmem:[#allocation5 + $0x630] sm:$0xff]
    %v585 = vld [vmem:[#allocation5 + $0x638] sm:$0xff]
    %v586 = vld [vmem:[#allocation5 + $0x640] sm:$0xff]
    %v587 = vld [vmem:[#allocation5 + $0x648] sm:$0xff]
    %v588 = vld [vmem:[#allocation5 + $0x650] sm:$0xff]
    %v589 = vld [vmem:[#allocation5 + $0x658] sm:$0xff]
    %v590 = vld [vmem:[#allocation5 + $0x660] sm:$0xff]
    %v591 = vld [vmem:[#allocation5 + $0x668] sm:$0xff]
    %v592 = vld [vmem:[#allocation5 + $0x670] sm:$0xff]
    %v593 = vld [vmem:[#allocation5 + $0x678] sm:$0xff]
    %v594 = vld [vmem:[#allocation5 + $0x680] sm:$0xff]
    %v595 = vld [vmem:[#allocation5 + $0x688] sm:$0xff]
    %v596 = vld [vmem:[#allocation5 + $0x690] sm:$0xff]
    %v597 = vld [vmem:[#allocation5 + $0x698] sm:$0xff]
    %v598 = vld [vmem:[#allocation5 + $0x6a0] sm:$0xff]
    %v599 = vld [vmem:[#allocation5 + $0x6a8] sm:$0xff]
    %v600 = vld [vmem:[#allocation5 + $0x6b0] sm:$0xff]
    %v601 = vld [vmem:[#allocation5 + $0x6b8] sm:$0xff]
    %v602 = vld [vmem:[#allocation5 + $0x6c0] sm:$0xff]
    %v603 = vld [vmem:[#allocation5 + $0x6c8] sm:$0xff]
    %v604 = vld [vmem:[#allocation5 + $0x6d0] sm:$0xff]
    %v605 = vld [vmem:[#allocation5 + $0x6d8] sm:$0xff]
    %v606 = vld [vmem:[#allocation5 + $0x6e0] sm:$0xff]
    %v607 = vld [vmem:[#allocation5 + $0x6e8] sm:$0xff]
    %v608 = vld [vmem:[#allocation5 + $0x6f0] sm:$0xff]
    %v609 = vld [vmem:[#allocation5 + $0x6f8] sm:$0xff]
    %v610 = vld [vmem:[#allocation5 + $0x700] sm:$0xff]
    %v611 = vld [vmem:[#allocation5 + $0x708] sm:$0xff]
    %v612 = vld [vmem:[#allocation5 + $0x710] sm:$0xff]
    %v613 = vld [vmem:[#allocation5 + $0x718] sm:$0xff]
    %v614 = vld [vmem:[#allocation5 + $0x720] sm:$0xff]
    %v615 = vld [vmem:[#allocation5 + $0x728] sm:$0xff]
    %v616 = vld [vmem:[#allocation5 + $0x730] sm:$0xff]
    %v617 = vld [vmem:[#allocation5 + $0x738] sm:$0xff]
    %v618 = vld [vmem:[#allocation5 + $0x740] sm:$0xff]
    %v619 = vld [vmem:[#allocation5 + $0x748] sm:$0xff]
    %v620 = vld [vmem:[#allocation5 + $0x750] sm:$0xff]
    %v621 = vld [vmem:[#allocation5 + $0x758] sm:$0xff]
    %v622 = vld [vmem:[#allocation5 + $0x760] sm:$0xff]
    %v623 = vld [vmem:[#allocation5 + $0x768] sm:$0xff]
    %v624 = vld [vmem:[#allocation5 + $0x770] sm:$0xff]
    %v625 = vld [vmem:[#allocation5 + $0x778] sm:$0xff]
    %v626 = vld [vmem:[#allocation5 + $0x780] sm:$0xff]
    %v627 = vld [vmem:[#allocation5 + $0x788] sm:$0xff]
    %v628 = vld [vmem:[#allocation5 + $0x790] sm:$0xff]
    %v629 = vld [vmem:[#allocation5 + $0x798] sm:$0xff]
    %v630 = vld [vmem:[#allocation5 + $0x7a0] sm:$0xff]
    %v631 = vld [vmem:[#allocation5 + $0x7a8] sm:$0xff]
    %v632 = vld [vmem:[#allocation5 + $0x7b0] sm:$0xff]
    %v633 = vld [vmem:[#allocation5 + $0x7b8] sm:$0xff]
    %v634 = vld [vmem:[#allocation5 + $0x7c0] sm:$0xff]
    %v635 = vld [vmem:[#allocation5 + $0x7c8] sm:$0xff]
    %v636 = vld [vmem:[#allocation5 + $0x7d0] sm:$0xff]
    %v637 = vld [vmem:[#allocation5 + $0x7d8] sm:$0xff]
    %v638 = vld [vmem:[#allocation5 + $0x7e0] sm:$0xff]
    %v639 = vld [vmem:[#allocation5 + $0x7e8] sm:$0xff]
    %v640 = vld [vmem:[#allocation5 + $0x7f0] sm:$0xff]
    %v641 = vld [vmem:[#allocation5 + $0x7f8] sm:$0xff]
    %v642 = vld [vmem:[#allocation5 + $0x800] sm:$0xff]
    %v643 = vld [vmem:[#allocation5 + $0x808] sm:$0xff]
    %v644 = vld [vmem:[#allocation5 + $0x810] sm:$0xff]
    %v645 = vld [vmem:[#allocation5 + $0x818] sm:$0xff]
    %v646 = vld [vmem:[#allocation5 + $0x820] sm:$0xff]
    %v647 = vld [vmem:[#allocation5 + $0x828] sm:$0xff]
    %v648 = vld [vmem:[#allocation5 + $0x830] sm:$0xff]
    %v649 = vld [vmem:[#allocation5 + $0x838] sm:$0xff]
    %v650 = vld [vmem:[#allocation5 + $0x840] sm:$0xff]
    %v651 = vld [vmem:[#allocation5 + $0x848] sm:$0xff]
    %v652 = vld [vmem:[#allocation5 + $0x850] sm:$0xff]
    %v653 = vld [vmem:[#allocation5 + $0x858] sm:$0xff]
    %v654 = vld [vmem:[#allocation5 + $0x860] sm:$0xff]
    %v655 = vld [vmem:[#allocation5 + $0x868] sm:$0xff]
    %v656 = vld [vmem:[#allocation5 + $0x870] sm:$0xff]
    %v657 = vld [vmem:[#allocation5 + $0x878] sm:$0xff]
    %v658 = vld [vmem:[#allocation5 + $0x880] sm:$0xff]
    %v659 = vld [vmem:[#allocation5 + $0x888] sm:$0xff]
    %v660 = vld [vmem:[#allocation5 + $0x890] sm:$0xff]
    %v661 = vld [vmem:[#allocation5 + $0x898] sm:$0xff]
    %v662 = vld [vmem:[#allocation5 + $0x8a0] sm:$0xff]
    %v663 = vld [vmem:[#allocation5 + $0x8a8] sm:$0xff]
    %v664 = vld [vmem:[#allocation5 + $0x8b0] sm:$0xff]
    %v665 = vld [vmem:[#allocation5 + $0x8b8] sm:$0xff]
    %v666 = vld [vmem:[#allocation5 + $0x8c0] sm:$0xff]
    %v667 = vld [vmem:[#allocation5 + $0x8c8] sm:$0xff]
    %v668 = vld [vmem:[#allocation5 + $0x8d0] sm:$0xff]
    %v669 = vld [vmem:[#allocation5 + $0x8d8] sm:$0xff]
    %v670 = vld [vmem:[#allocation5 + $0x8e0] sm:$0xff]
    %v671 = vld [vmem:[#allocation5 + $0x8e8] sm:$0xff]
    %v672 = vld [vmem:[#allocation5 + $0x8f0] sm:$0xff]
    %v673 = vld [vmem:[#allocation5 + $0x8f8] sm:$0xff]
    %v674 = vld [vmem:[#allocation7] sm:$0x3]
    %v676 = vlaneseq
    %v677 = vshrl.u32 %v676, 7
    %v678 = vsub.s32 0, %v677
    %v679 = vrot.slane %v674, %v678
    %v680 = vlaneseq
    %v681 = vshrl.u32 %v680, 7
    %v682 = vsub.s32 1, %v681
    %v683 = vrot.slane %v674, %v682
    %v974 = vunpack.c.l.b16 %v386
    %v975 = vunpack.c.h.b16 %v386
    %v976 = vunpack.c.l.b16 %v387
    %v977 = vunpack.c.h.b16 %v387
    %v978 = vunpack.c.l.b16 %v388
    %v979 = vunpack.c.h.b16 %v388
    %v980 = vunpack.c.l.b16 %v389
    %v981 = vunpack.c.h.b16 %v389
    %v982 = vunpack.c.l.b16 %v390
    %v983 = vunpack.c.h.b16 %v390
    %v984 = vunpack.c.l.b16 %v391
    %v985 = vunpack.c.h.b16 %v391
    %v986 = vunpack.c.l.b16 %v392
    %v987 = vunpack.c.h.b16 %v392
    %v988 = vunpack.c.l.b16 %v393
    %v989 = vunpack.c.h.b16 %v393
    %v990 = vunpack.c.l.b16 %v394
    %v991 = vunpack.c.h.b16 %v394
    %v992 = vunpack.c.l.b16 %v395
    %v993 = vunpack.c.h.b16 %v395
    %v994 = vunpack.c.l.b16 %v396
    %v995 = vunpack.c.h.b16 %v396
    %v996 = vunpack.c.l.b16 %v397
    %v997 = vunpack.c.h.b16 %v397
    %v998 = vunpack.c.l.b16 %v398
    %v999 = vunpack.c.h.b16 %v398
    %v1000 = vunpack.c.l.b16 %v399
    %v1001 = vunpack.c.h.b16 %v399
    %v1002 = vunpack.c.l.b16 %v400
    %v1003 = vunpack.c.h.b16 %v400
    %v1004 = vunpack.c.l.b16 %v401
    %v1005 = vunpack.c.h.b16 %v401
    %v1006 = vunpack.c.l.b16 %v402
    %v1007 = vunpack.c.h.b16 %v402
    %v1008 = vunpack.c.l.b16 %v403
    %v1009 = vunpack.c.h.b16 %v403
    %v1010 = vunpack.c.l.b16 %v404
    %v1011 = vunpack.c.h.b16 %v404
    %v1012 = vunpack.c.l.b16 %v405
    %v1013 = vunpack.c.h.b16 %v405
    %v1014 = vunpack.c.l.b16 %v406
    %v1015 = vunpack.c.h.b16 %v406
    %v1016 = vunpack.c.l.b16 %v407
    %v1017 = vunpack.c.h.b16 %v407
    %v1018 = vunpack.c.l.b16 %v408
    %v1019 = vunpack.c.h.b16 %v408
    %v1020 = vunpack.c.l.b16 %v409
    %v1021 = vunpack.c.h.b16 %v409
    %v1022 = vunpack.c.l.b16 %v410
    %v1023 = vunpack.c.h.b16 %v410
    %v1024 = vunpack.c.l.b16 %v411
    %v1025 = vunpack.c.h.b16 %v411
    %v1026 = vunpack.c.l.b16 %v412
    %v1027 = vunpack.c.h.b16 %v412
    %v1028 = vunpack.c.l.b16 %v413
    %v1029 = vunpack.c.h.b16 %v413
    %v1030 = vunpack.c.l.b16 %v414
    %v1031 = vunpack.c.h.b16 %v414
    %v1032 = vunpack.c.l.b16 %v415
    %v1033 = vunpack.c.h.b16 %v415
    %v1034 = vunpack.c.l.b16 %v416
    %v1035 = vunpack.c.h.b16 %v416
    %v1036 = vunpack.c.l.b16 %v417
    %v1037 = vunpack.c.h.b16 %v417
    %v1038 = vunpack.c.l.b16 %v418
    %v1039 = vunpack.c.h.b16 %v418
    %v1040 = vunpack.c.l.b16 %v419
    %v1041 = vunpack.c.h.b16 %v419
    %v1042 = vunpack.c.l.b16 %v420
    %v1043 = vunpack.c.h.b16 %v420
    %v1044 = vunpack.c.l.b16 %v421
    %v1045 = vunpack.c.h.b16 %v421
    %v1046 = vunpack.c.l.b16 %v422
    %v1047 = vunpack.c.h.b16 %v422
    %v1048 = vunpack.c.l.b16 %v423
    %v1049 = vunpack.c.h.b16 %v423
    %v1050 = vunpack.c.l.b16 %v424
    %v1051 = vunpack.c.h.b16 %v424
    %v1052 = vunpack.c.l.b16 %v425
    %v1053 = vunpack.c.h.b16 %v425
    %v1054 = vunpack.c.l.b16 %v426
    %v1055 = vunpack.c.h.b16 %v426
    %v1056 = vunpack.c.l.b16 %v427
    %v1057 = vunpack.c.h.b16 %v427
    %v1058 = vunpack.c.l.b16 %v428
    %v1059 = vunpack.c.h.b16 %v428
    %v1060 = vunpack.c.l.b16 %v429
    %v1061 = vunpack.c.h.b16 %v429
    %v1062 = vunpack.c.l.b16 %v430
    %v1063 = vunpack.c.h.b16 %v430
    %v1064 = vunpack.c.l.b16 %v431
    %v1065 = vunpack.c.h.b16 %v431
    %v1066 = vunpack.c.l.b16 %v432
    %v1067 = vunpack.c.h.b16 %v432
    %v1068 = vunpack.c.l.b16 %v433
    %v1069 = vunpack.c.h.b16 %v433
    %v1070 = vunpack.c.l.b16 %v434
    %v1071 = vunpack.c.h.b16 %v434
    %v1072 = vunpack.c.l.b16 %v435
    %v1073 = vunpack.c.h.b16 %v435
    %v1074 = vunpack.c.l.b16 %v436
    %v1075 = vunpack.c.h.b16 %v436
    %v1076 = vunpack.c.l.b16 %v437
    %v1077 = vunpack.c.h.b16 %v437
    %v1078 = vunpack.c.l.b16 %v438
    %v1079 = vunpack.c.h.b16 %v438
    %v1080 = vunpack.c.l.b16 %v439
    %v1081 = vunpack.c.h.b16 %v439
    %v1082 = vunpack.c.l.b16 %v440
    %v1083 = vunpack.c.h.b16 %v440
    %v1084 = vunpack.c.l.b16 %v441
    %v1085 = vunpack.c.h.b16 %v441
    %v1086 = vunpack.c.l.b16 %v442
    %v1087 = vunpack.c.h.b16 %v442
    %v1088 = vunpack.c.l.b16 %v443
    %v1089 = vunpack.c.h.b16 %v443
    %v1090 = vunpack.c.l.b16 %v444
    %v1091 = vunpack.c.h.b16 %v444
    %v1092 = vunpack.c.l.b16 %v445
    %v1093 = vunpack.c.h.b16 %v445
    %v1094 = vunpack.c.l.b16 %v446
    %v1095 = vunpack.c.h.b16 %v446
    %v1096 = vunpack.c.l.b16 %v447
    %v1097 = vunpack.c.h.b16 %v447
    %v1098 = vunpack.c.l.b16 %v448
    %v1099 = vunpack.c.h.b16 %v448
    %v1100 = vunpack.c.l.b16 %v449
    %v1101 = vunpack.c.h.b16 %v449
    %v1102 = vunpack.c.l.b16 %v450
    %v1103 = vunpack.c.h.b16 %v450
    %v1104 = vunpack.c.l.b16 %v451
    %v1105 = vunpack.c.h.b16 %v451
    %v1106 = vunpack.c.l.b16 %v452
    %v1107 = vunpack.c.h.b16 %v452
    %v1108 = vunpack.c.l.b16 %v453
    %v1109 = vunpack.c.h.b16 %v453
    %v1110 = vunpack.c.l.b16 %v454
    %v1111 = vunpack.c.h.b16 %v454
    %v1112 = vunpack.c.l.b16 %v455
    %v1113 = vunpack.c.h.b16 %v455
    %v1114 = vunpack.c.l.b16 %v456
    %v1115 = vunpack.c.h.b16 %v456
    %v1116 = vunpack.c.l.b16 %v457
    %v1117 = vunpack.c.h.b16 %v457
    %v1118 = vunpack.c.l.b16 %v458
    %v1119 = vunpack.c.h.b16 %v458
    %v1120 = vunpack.c.l.b16 %v459
    %v1121 = vunpack.c.h.b16 %v459
    %v1122 = vunpack.c.l.b16 %v460
    %v1123 = vunpack.c.h.b16 %v460
    %v1124 = vunpack.c.l.b16 %v461
    %v1125 = vunpack.c.h.b16 %v461
    %v1126 = vunpack.c.l.b16 %v462
    %v1127 = vunpack.c.h.b16 %v462
    %v1128 = vunpack.c.l.b16 %v463
    %v1129 = vunpack.c.h.b16 %v463
    %v1130 = vunpack.c.l.b16 %v464
    %v1131 = vunpack.c.h.b16 %v464
    %v1132 = vunpack.c.l.b16 %v465
    %v1133 = vunpack.c.h.b16 %v465
    %v1134 = vunpack.c.l.b16 %v466
    %v1135 = vunpack.c.h.b16 %v466
    %v1136 = vunpack.c.l.b16 %v467
    %v1137 = vunpack.c.h.b16 %v467
    %v1138 = vunpack.c.l.b16 %v468
    %v1139 = vunpack.c.h.b16 %v468
    %v1140 = vunpack.c.l.b16 %v469
    %v1141 = vunpack.c.h.b16 %v469
    %v1142 = vunpack.c.l.b16 %v470
    %v1143 = vunpack.c.h.b16 %v470
    %v1144 = vunpack.c.l.b16 %v471
    %v1145 = vunpack.c.h.b16 %v471
    %v1146 = vunpack.c.l.b16 %v472
    %v1147 = vunpack.c.h.b16 %v472
    %v1148 = vunpack.c.l.b16 %v473
    %v1149 = vunpack.c.h.b16 %v473
    %v1150 = vunpack.c.l.b16 %v474
    %v1151 = vunpack.c.h.b16 %v474
    %v1152 = vunpack.c.l.b16 %v475
    %v1153 = vunpack.c.h.b16 %v475
    %v1154 = vunpack.c.l.b16 %v476
    %v1155 = vunpack.c.h.b16 %v476
    %v1156 = vunpack.c.l.b16 %v477
    %v1157 = vunpack.c.h.b16 %v477
    %v1158 = vunpack.c.l.b16 %v478
    %v1159 = vunpack.c.h.b16 %v478
    %v1160 = vunpack.c.l.b16 %v479
    %v1161 = vunpack.c.h.b16 %v479
    %v1162 = vunpack.c.l.b16 %v480
    %v1163 = vunpack.c.h.b16 %v480
    %v1164 = vunpack.c.l.b16 %v481
    %v1165 = vunpack.c.h.b16 %v481
    %v1166 = vunpack.c.l.b16 %v482
    %v1167 = vunpack.c.h.b16 %v482
    %v1168 = vunpack.c.l.b16 %v483
    %v1169 = vunpack.c.h.b16 %v483
    %v1170 = vunpack.c.l.b16 %v484
    %v1171 = vunpack.c.h.b16 %v484
    %v1172 = vunpack.c.l.b16 %v485
    %v1173 = vunpack.c.h.b16 %v485
    %v1174 = vunpack.c.l.b16 %v486
    %v1175 = vunpack.c.h.b16 %v486
    %v1176 = vunpack.c.l.b16 %v487
    %v1177 = vunpack.c.h.b16 %v487
    %v1178 = vunpack.c.l.b16 %v488
    %v1179 = vunpack.c.h.b16 %v488
    %v1180 = vunpack.c.l.b16 %v489
    %v1181 = vunpack.c.h.b16 %v489
    %v1182 = vunpack.c.l.b16 %v490
    %v1183 = vunpack.c.h.b16 %v490
    %v1184 = vunpack.c.l.b16 %v491
    %v1185 = vunpack.c.h.b16 %v491
    %v1186 = vunpack.c.l.b16 %v492
    %v1187 = vunpack.c.h.b16 %v492
    %v1188 = vunpack.c.l.b16 %v493
    %v1189 = vunpack.c.h.b16 %v493
    %v1190 = vunpack.c.l.b16 %v494
    %v1191 = vunpack.c.h.b16 %v494
    %v1192 = vunpack.c.l.b16 %v495
    %v1193 = vunpack.c.h.b16 %v495
    %v1194 = vunpack.c.l.b16 %v496
    %v1195 = vunpack.c.h.b16 %v496
    %v1196 = vunpack.c.l.b16 %v497
    %v1197 = vunpack.c.h.b16 %v497
    %v1198 = vunpack.c.l.b16 %v498
    %v1199 = vunpack.c.h.b16 %v498
    %v1200 = vunpack.c.l.b16 %v499
    %v1201 = vunpack.c.h.b16 %v499
    %v1202 = vunpack.c.l.b16 %v500
    %v1203 = vunpack.c.h.b16 %v500
    %v1204 = vunpack.c.l.b16 %v501
    %v1205 = vunpack.c.h.b16 %v501
    %v1206 = vunpack.c.l.b16 %v502
    %v1207 = vunpack.c.h.b16 %v502
    %v1208 = vunpack.c.l.b16 %v503
    %v1209 = vunpack.c.h.b16 %v503
    %v1210 = vunpack.c.l.b16 %v504
    %v1211 = vunpack.c.h.b16 %v504
    %v1212 = vunpack.c.l.b16 %v505
    %v1213 = vunpack.c.h.b16 %v505
    %v1214 = vunpack.c.l.b16 %v506
    %v1215 = vunpack.c.h.b16 %v506
    %v1216 = vunpack.c.l.b16 %v507
    %v1217 = vunpack.c.h.b16 %v507
    %v1218 = vunpack.c.l.b16 %v508
    %v1219 = vunpack.c.h.b16 %v508
    %v1220 = vunpack.c.l.b16 %v509
    %v1221 = vunpack.c.h.b16 %v509
    %v1222 = vunpack.c.l.b16 %v510
    %v1223 = vunpack.c.h.b16 %v510
    %v1224 = vunpack.c.l.b16 %v511
    %v1225 = vunpack.c.h.b16 %v511
    %v1226 = vunpack.c.l.b16 %v512
    %v1227 = vunpack.c.h.b16 %v512
    %v1228 = vunpack.c.l.b16 %v513
    %v1229 = vunpack.c.h.b16 %v513
    %v1230 = vunpack.c.l.b16 %v514
    %v1231 = vunpack.c.h.b16 %v514
    %v1232 = vunpack.c.l.b16 %v515
    %v1233 = vunpack.c.h.b16 %v515
    %v1234 = vunpack.c.l.b16 %v516
    %v1235 = vunpack.c.h.b16 %v516
    %v1236 = vunpack.c.l.b16 %v517
    %v1237 = vunpack.c.h.b16 %v517
    %v1238 = vunpack.c.l.b16 %v518
    %v1239 = vunpack.c.h.b16 %v518
    %v1240 = vunpack.c.l.b16 %v519
    %v1241 = vunpack.c.h.b16 %v519
    %v1242 = vunpack.c.l.b16 %v520
    %v1243 = vunpack.c.h.b16 %v520
    %v1244 = vunpack.c.l.b16 %v521
    %v1245 = vunpack.c.h.b16 %v521
    %v1246 = vunpack.c.l.b16 %v522
    %v1247 = vunpack.c.h.b16 %v522
    %v1248 = vunpack.c.l.b16 %v523
    %v1249 = vunpack.c.h.b16 %v523
    %v1250 = vunpack.c.l.b16 %v524
    %v1251 = vunpack.c.h.b16 %v524
    %v1252 = vunpack.c.l.b16 %v525
    %v1253 = vunpack.c.h.b16 %v525
    %v1254 = vunpack.c.l.b16 %v526
    %v1255 = vunpack.c.h.b16 %v526
    %v1256 = vunpack.c.l.b16 %v527
    %v1257 = vunpack.c.h.b16 %v527
    %v1258 = vunpack.c.l.b16 %v528
    %v1259 = vunpack.c.h.b16 %v528
    %v1260 = vunpack.c.l.b16 %v529
    %v1261 = vunpack.c.h.b16 %v529
    %v1262 = vunpack.c.l.b16 %v530
    %v1263 = vunpack.c.h.b16 %v530
    %v1264 = vunpack.c.l.b16 %v531
    %v1265 = vunpack.c.h.b16 %v531
    %v1266 = vunpack.c.l.b16 %v532
    %v1267 = vunpack.c.h.b16 %v532
    %v1268 = vunpack.c.l.b16 %v533
    %v1269 = vunpack.c.h.b16 %v533
    %v1270 = vunpack.c.l.b16 %v534
    %v1271 = vunpack.c.h.b16 %v534
    %v1272 = vunpack.c.l.b16 %v535
    %v1273 = vunpack.c.h.b16 %v535
    %v1274 = vunpack.c.l.b16 %v536
    %v1275 = vunpack.c.h.b16 %v536
    %v1276 = vunpack.c.l.b16 %v537
    %v1277 = vunpack.c.h.b16 %v537
    %v1278 = vunpack.c.l.b16 %v538
    %v1279 = vunpack.c.h.b16 %v538
    %v1280 = vunpack.c.l.b16 %v539
    %v1281 = vunpack.c.h.b16 %v539
    %v1282 = vunpack.c.l.b16 %v540
    %v1283 = vunpack.c.h.b16 %v540
    %v1284 = vunpack.c.l.b16 %v541
    %v1285 = vunpack.c.h.b16 %v541
    %v1286 = vunpack.c.l.b16 %v542
    %v1287 = vunpack.c.h.b16 %v542
    %v1288 = vunpack.c.l.b16 %v543
    %v1289 = vunpack.c.h.b16 %v543
    %v1290 = vunpack.c.l.b16 %v544
    %v1291 = vunpack.c.h.b16 %v544
    %v1292 = vunpack.c.l.b16 %v545
    %v1293 = vunpack.c.h.b16 %v545
    %v1294 = vunpack.c.l.b16 %v546
    %v1295 = vunpack.c.h.b16 %v546
    %v1296 = vunpack.c.l.b16 %v547
    %v1297 = vunpack.c.h.b16 %v547
    %v1298 = vunpack.c.l.b16 %v548
    %v1299 = vunpack.c.h.b16 %v548
    %v1300 = vunpack.c.l.b16 %v549
    %v1301 = vunpack.c.h.b16 %v549
    %v1302 = vunpack.c.l.b16 %v550
    %v1303 = vunpack.c.h.b16 %v550
    %v1304 = vunpack.c.l.b16 %v551
    %v1305 = vunpack.c.h.b16 %v551
    %v1306 = vunpack.c.l.b16 %v552
    %v1307 = vunpack.c.h.b16 %v552
    %v1308 = vunpack.c.l.b16 %v553
    %v1309 = vunpack.c.h.b16 %v553
    %v1310 = vunpack.c.l.b16 %v554
    %v1311 = vunpack.c.h.b16 %v554
    %v1312 = vunpack.c.l.b16 %v555
    %v1313 = vunpack.c.h.b16 %v555
    %v1314 = vunpack.c.l.b16 %v556
    %v1315 = vunpack.c.h.b16 %v556
    %v1316 = vunpack.c.l.b16 %v557
    %v1317 = vunpack.c.h.b16 %v557
    %v1318 = vunpack.c.l.b16 %v558
    %v1319 = vunpack.c.h.b16 %v558
    %v1320 = vunpack.c.l.b16 %v559
    %v1321 = vunpack.c.h.b16 %v559
    %v1322 = vunpack.c.l.b16 %v560
    %v1323 = vunpack.c.h.b16 %v560
    %v1324 = vunpack.c.l.b16 %v561
    %v1325 = vunpack.c.h.b16 %v561
    %v1326 = vunpack.c.l.b16 %v562
    %v1327 = vunpack.c.h.b16 %v562
    %v1328 = vunpack.c.l.b16 %v563
    %v1329 = vunpack.c.h.b16 %v563
    %v1330 = vunpack.c.l.b16 %v564
    %v1331 = vunpack.c.h.b16 %v564
    %v1332 = vunpack.c.l.b16 %v565
    %v1333 = vunpack.c.h.b16 %v565
    %v1334 = vunpack.c.l.b16 %v566
    %v1335 = vunpack.c.h.b16 %v566
    %v1336 = vunpack.c.l.b16 %v567
    %v1337 = vunpack.c.h.b16 %v567
    %v1338 = vunpack.c.l.b16 %v568
    %v1339 = vunpack.c.h.b16 %v568
    %v1340 = vunpack.c.l.b16 %v569
    %v1341 = vunpack.c.h.b16 %v569
    %v1342 = vunpack.c.l.b16 %v570
    %v1343 = vunpack.c.h.b16 %v570
    %v1344 = vunpack.c.l.b16 %v571
    %v1345 = vunpack.c.h.b16 %v571
    %v1346 = vunpack.c.l.b16 %v572
    %v1347 = vunpack.c.h.b16 %v572
    %v1348 = vunpack.c.l.b16 %v573
    %v1349 = vunpack.c.h.b16 %v573
    %v1350 = vunpack.c.l.b16 %v574
    %v1351 = vunpack.c.h.b16 %v574
    %v1352 = vunpack.c.l.b16 %v575
    %v1353 = vunpack.c.h.b16 %v575
    %v1354 = vunpack.c.l.b16 %v576
    %v1355 = vunpack.c.h.b16 %v576
    %v1356 = vunpack.c.l.b16 %v577
    %v1357 = vunpack.c.h.b16 %v577
    %v1358 = vunpack.c.l.b16 %v578
    %v1359 = vunpack.c.h.b16 %v578
    %v1360 = vunpack.c.l.b16 %v579
    %v1361 = vunpack.c.h.b16 %v579
    %v1362 = vunpack.c.l.b16 %v580
    %v1363 = vunpack.c.h.b16 %v580
    %v1364 = vunpack.c.l.b16 %v581
    %v1365 = vunpack.c.h.b16 %v581
    %v1366 = vunpack.c.l.b16 %v582
    %v1367 = vunpack.c.h.b16 %v582
    %v1368 = vunpack.c.l.b16 %v583
    %v1369 = vunpack.c.h.b16 %v583
    %v1370 = vunpack.c.l.b16 %v584
    %v1371 = vunpack.c.h.b16 %v584
    %v1372 = vunpack.c.l.b16 %v585
    %v1373 = vunpack.c.h.b16 %v585
    %v1374 = vunpack.c.l.b16 %v586
    %v1375 = vunpack.c.h.b16 %v586
    %v1376 = vunpack.c.l.b16 %v587
    %v1377 = vunpack.c.h.b16 %v587
    %v1378 = vunpack.c.l.b16 %v588
    %v1379 = vunpack.c.h.b16 %v588
    %v1380 = vunpack.c.l.b16 %v589
    %v1381 = vunpack.c.h.b16 %v589
    %v1382 = vunpack.c.l.b16 %v590
    %v1383 = vunpack.c.h.b16 %v590
    %v1384 = vunpack.c.l.b16 %v591
    %v1385 = vunpack.c.h.b16 %v591
    %v1386 = vunpack.c.l.b16 %v592
    %v1387 = vunpack.c.h.b16 %v592
    %v1388 = vunpack.c.l.b16 %v593
    %v1389 = vunpack.c.h.b16 %v593
    %v1390 = vunpack.c.l.b16 %v594
    %v1391 = vunpack.c.h.b16 %v594
    %v1392 = vunpack.c.l.b16 %v595
    %v1393 = vunpack.c.h.b16 %v595
    %v1394 = vunpack.c.l.b16 %v596
    %v1395 = vunpack.c.h.b16 %v596
    %v1396 = vunpack.c.l.b16 %v597
    %v1397 = vunpack.c.h.b16 %v597
    %v1398 = vunpack.c.l.b16 %v598
    %v1399 = vunpack.c.h.b16 %v598
    %v1400 = vunpack.c.l.b16 %v599
    %v1401 = vunpack.c.h.b16 %v599
    %v1402 = vunpack.c.l.b16 %v600
    %v1403 = vunpack.c.h.b16 %v600
    %v1404 = vunpack.c.l.b16 %v601
    %v1405 = vunpack.c.h.b16 %v601
    %v1406 = vunpack.c.l.b16 %v602
    %v1407 = vunpack.c.h.b16 %v602
    %v1408 = vunpack.c.l.b16 %v603
    %v1409 = vunpack.c.h.b16 %v603
    %v1410 = vunpack.c.l.b16 %v604
    %v1411 = vunpack.c.h.b16 %v604
    %v1412 = vunpack.c.l.b16 %v605
    %v1413 = vunpack.c.h.b16 %v605
    %v1414 = vunpack.c.l.b16 %v606
    %v1415 = vunpack.c.h.b16 %v606
    %v1416 = vunpack.c.l.b16 %v607
    %v1417 = vunpack.c.h.b16 %v607
    %v1418 = vunpack.c.l.b16 %v608
    %v1419 = vunpack.c.h.b16 %v608
    %v1420 = vunpack.c.l.b16 %v609
    %v1421 = vunpack.c.h.b16 %v609
    %v1422 = vunpack.c.l.b16 %v610
    %v1423 = vunpack.c.h.b16 %v610
    %v1424 = vunpack.c.l.b16 %v611
    %v1425 = vunpack.c.h.b16 %v611
    %v1426 = vunpack.c.l.b16 %v612
    %v1427 = vunpack.c.h.b16 %v612
    %v1428 = vunpack.c.l.b16 %v613
    %v1429 = vunpack.c.h.b16 %v613
    %v1430 = vunpack.c.l.b16 %v614
    %v1431 = vunpack.c.h.b16 %v614
    %v1432 = vunpack.c.l.b16 %v615
    %v1433 = vunpack.c.h.b16 %v615
    %v1434 = vunpack.c.l.b16 %v616
    %v1435 = vunpack.c.h.b16 %v616
    %v1436 = vunpack.c.l.b16 %v617
    %v1437 = vunpack.c.h.b16 %v617
    %v1438 = vunpack.c.l.b16 %v618
    %v1439 = vunpack.c.h.b16 %v618
    %v1440 = vunpack.c.l.b16 %v619
    %v1441 = vunpack.c.h.b16 %v619
    %v1442 = vunpack.c.l.b16 %v620
    %v1443 = vunpack.c.h.b16 %v620
    %v1444 = vunpack.c.l.b16 %v621
    %v1445 = vunpack.c.h.b16 %v621
    %v1446 = vunpack.c.l.b16 %v622
    %v1447 = vunpack.c.h.b16 %v622
    %v1448 = vunpack.c.l.b16 %v623
    %v1449 = vunpack.c.h.b16 %v623
    %v1450 = vunpack.c.l.b16 %v624
    %v1451 = vunpack.c.h.b16 %v624
    %v1452 = vunpack.c.l.b16 %v625
    %v1453 = vunpack.c.h.b16 %v625
    %v1454 = vunpack.c.l.b16 %v626
    %v1455 = vunpack.c.h.b16 %v626
    %v1456 = vunpack.c.l.b16 %v627
    %v1457 = vunpack.c.h.b16 %v627
    %v1458 = vunpack.c.l.b16 %v628
    %v1459 = vunpack.c.h.b16 %v628
    %v1460 = vunpack.c.l.b16 %v629
    %v1461 = vunpack.c.h.b16 %v629
    %v1462 = vunpack.c.l.b16 %v630
    %v1463 = vunpack.c.h.b16 %v630
    %v1464 = vunpack.c.l.b16 %v631
    %v1465 = vunpack.c.h.b16 %v631
    %v1466 = vunpack.c.l.b16 %v632
    %v1467 = vunpack.c.h.b16 %v632
    %v1468 = vunpack.c.l.b16 %v633
    %v1469 = vunpack.c.h.b16 %v633
    %v1470 = vunpack.c.l.b16 %v634
    %v1471 = vunpack.c.h.b16 %v634
    %v1472 = vunpack.c.l.b16 %v635
    %v1473 = vunpack.c.h.b16 %v635
    %v1474 = vunpack.c.l.b16 %v636
    %v1475 = vunpack.c.h.b16 %v636
    %v1476 = vunpack.c.l.b16 %v637
    %v1477 = vunpack.c.h.b16 %v637
    %v1478 = vunpack.c.l.b16 %v638
    %v1479 = vunpack.c.h.b16 %v638
    %v1480 = vunpack.c.l.b16 %v639
    %v1481 = vunpack.c.h.b16 %v639
    %v1482 = vunpack.c.l.b16 %v640
    %v1483 = vunpack.c.h.b16 %v640
    %v1484 = vunpack.c.l.b16 %v641
    %v1485 = vunpack.c.h.b16 %v641
    %v1486 = vunpack.c.l.b16 %v642
    %v1487 = vunpack.c.h.b16 %v642
    %v1488 = vunpack.c.l.b16 %v643
    %v1489 = vunpack.c.h.b16 %v643
    %v1490 = vunpack.c.l.b16 %v644
    %v1491 = vunpack.c.h.b16 %v644
    %v1492 = vunpack.c.l.b16 %v645
    %v1493 = vunpack.c.h.b16 %v645
    %v1494 = vunpack.c.l.b16 %v646
    %v1495 = vunpack.c.h.b16 %v646
    %v1496 = vunpack.c.l.b16 %v647
    %v1497 = vunpack.c.h.b16 %v647
    %v1498 = vunpack.c.l.b16 %v648
    %v1499 = vunpack.c.h.b16 %v648
    %v1500 = vunpack.c.l.b16 %v649
    %v1501 = vunpack.c.h.b16 %v649
    %v1502 = vunpack.c.l.b16 %v650
    %v1503 = vunpack.c.h.b16 %v650
    %v1504 = vunpack.c.l.b16 %v651
    %v1505 = vunpack.c.h.b16 %v651
    %v1506 = vunpack.c.l.b16 %v652
    %v1507 = vunpack.c.h.b16 %v652
    %v1508 = vunpack.c.l.b16 %v653
    %v1509 = vunpack.c.h.b16 %v653
    %v1510 = vunpack.c.l.b16 %v654
    %v1511 = vunpack.c.h.b16 %v654
    %v1512 = vunpack.c.l.b16 %v655
    %v1513 = vunpack.c.h.b16 %v655
    %v1514 = vunpack.c.l.b16 %v656
    %v1515 = vunpack.c.h.b16 %v656
    %v1516 = vunpack.c.l.b16 %v657
    %v1517 = vunpack.c.h.b16 %v657
    %v1518 = vunpack.c.l.b16 %v658
    %v1519 = vunpack.c.h.b16 %v658
    %v1520 = vunpack.c.l.b16 %v659
    %v1521 = vunpack.c.h.b16 %v659
    %v1522 = vunpack.c.l.b16 %v660
    %v1523 = vunpack.c.h.b16 %v660
    %v1524 = vunpack.c.l.b16 %v661
    %v1525 = vunpack.c.h.b16 %v661
    %v1526 = vunpack.c.l.b16 %v662
    %v1527 = vunpack.c.h.b16 %v662
    %v1528 = vunpack.c.l.b16 %v663
    %v1529 = vunpack.c.h.b16 %v663
    %v1530 = vunpack.c.l.b16 %v664
    %v1531 = vunpack.c.h.b16 %v664
    %v1532 = vunpack.c.l.b16 %v665
    %v1533 = vunpack.c.h.b16 %v665
    %v1534 = vunpack.c.l.b16 %v666
    %v1535 = vunpack.c.h.b16 %v666
    %v1536 = vunpack.c.l.b16 %v667
    %v1537 = vunpack.c.h.b16 %v667
    %v1538 = vunpack.c.l.b16 %v668
    %v1539 = vunpack.c.h.b16 %v668
    %v1540 = vunpack.c.l.b16 %v669
    %v1541 = vunpack.c.h.b16 %v669
    %v1542 = vunpack.c.l.b16 %v670
    %v1543 = vunpack.c.h.b16 %v670
    %v1544 = vunpack.c.l.b16 %v671
    %v1545 = vunpack.c.h.b16 %v671
    %v1546 = vunpack.c.l.b16 %v672
    %v1547 = vunpack.c.h.b16 %v672
    %v1548 = vunpack.c.l.b16 %v673
    %v1549 = vunpack.c.h.b16 %v673
    %v1550 = vpack.c.b16 %v976, %v974
    %v1551 = vpack.c.b16 %v977, %v975
    %v1552 = vpack.c.b16 %v980, %v978
    %v1553 = vpack.c.b16 %v981, %v979
    %v1554 = vpack.c.b16 %v984, %v982
    %v1555 = vpack.c.b16 %v985, %v983
    %v1556 = vpack.c.b16 %v988, %v986
    %v1557 = vpack.c.b16 %v989, %v987
    %v1558 = vpack.c.b16 %v992, %v990
    %v1559 = vpack.c.b16 %v993, %v991
    %v1560 = vpack.c.b16 %v996, %v994
    %v1561 = vpack.c.b16 %v997, %v995
    %v1562 = vpack.c.b16 %v1000, %v998
    %v1563 = vpack.c.b16 %v1001, %v999
    %v1564 = vpack.c.b16 %v1004, %v1002
    %v1565 = vpack.c.b16 %v1005, %v1003
    %v1566 = vpack.c.b16 %v1008, %v1006
    %v1567 = vpack.c.b16 %v1009, %v1007
    %v1568 = vpack.c.b16 %v1012, %v1010
    %v1569 = vpack.c.b16 %v1013, %v1011
    %v1570 = vpack.c.b16 %v1016, %v1014
    %v1571 = vpack.c.b16 %v1017, %v1015
    %v1572 = vpack.c.b16 %v1020, %v1018
    %v1573 = vpack.c.b16 %v1021, %v1019
    %v1574 = vpack.c.b16 %v1024, %v1022
    %v1575 = vpack.c.b16 %v1025, %v1023
    %v1576 = vpack.c.b16 %v1028, %v1026
    %v1577 = vpack.c.b16 %v1029, %v1027
    %v1578 = vpack.c.b16 %v1032, %v1030
    %v1579 = vpack.c.b16 %v1033, %v1031
    %v1580 = vpack.c.b16 %v1036, %v1034
    %v1581 = vpack.c.b16 %v1037, %v1035
    %v1582 = vpack.c.b16 %v1040, %v1038
    %v1583 = vpack.c.b16 %v1041, %v1039
    %v1584 = vpack.c.b16 %v1044, %v1042
    %v1585 = vpack.c.b16 %v1045, %v1043
    %v1586 = vpack.c.b16 %v1048, %v1046
    %v1587 = vpack.c.b16 %v1049, %v1047
    %v1588 = vpack.c.b16 %v1052, %v1050
    %v1589 = vpack.c.b16 %v1053, %v1051
    %v1590 = vpack.c.b16 %v1056, %v1054
    %v1591 = vpack.c.b16 %v1057, %v1055
    %v1592 = vpack.c.b16 %v1060, %v1058
    %v1593 = vpack.c.b16 %v1061, %v1059
    %v1594 = vpack.c.b16 %v1064, %v1062
    %v1595 = vpack.c.b16 %v1065, %v1063
    %v1596 = vpack.c.b16 %v1068, %v1066
    %v1597 = vpack.c.b16 %v1069, %v1067
    %v1598 = vpack.c.b16 %v1072, %v1070
    %v1599 = vpack.c.b16 %v1073, %v1071
    %v1600 = vpack.c.b16 %v1076, %v1074
    %v1601 = vpack.c.b16 %v1077, %v1075
    %v1602 = vpack.c.b16 %v1080, %v1078
    %v1603 = vpack.c.b16 %v1081, %v1079
    %v1604 = vpack.c.b16 %v1084, %v1082
    %v1605 = vpack.c.b16 %v1085, %v1083
    %v1606 = vpack.c.b16 %v1088, %v1086
    %v1607 = vpack.c.b16 %v1089, %v1087
    %v1608 = vpack.c.b16 %v1092, %v1090
    %v1609 = vpack.c.b16 %v1093, %v1091
    %v1610 = vpack.c.b16 %v1096, %v1094
    %v1611 = vpack.c.b16 %v1097, %v1095
    %v1612 = vpack.c.b16 %v1100, %v1098
    %v1613 = vpack.c.b16 %v1101, %v1099
    %v1614 = vpack.c.b16 %v1104, %v1102
    %v1615 = vpack.c.b16 %v1105, %v1103
    %v1616 = vpack.c.b16 %v1108, %v1106
    %v1617 = vpack.c.b16 %v1109, %v1107
    %v1618 = vpack.c.b16 %v1112, %v1110
    %v1619 = vpack.c.b16 %v1113, %v1111
    %v1620 = vpack.c.b16 %v1116, %v1114
    %v1621 = vpack.c.b16 %v1117, %v1115
    %v1622 = vpack.c.b16 %v1120, %v1118
    %v1623 = vpack.c.b16 %v1121, %v1119
    %v1624 = vpack.c.b16 %v1124, %v1122
    %v1625 = vpack.c.b16 %v1125, %v1123
    %v1626 = vpack.c.b16 %v1128, %v1126
    %v1627 = vpack.c.b16 %v1129, %v1127
    %v1628 = vpack.c.b16 %v1132, %v1130
    %v1629 = vpack.c.b16 %v1133, %v1131
    %v1630 = vpack.c.b16 %v1136, %v1134
    %v1631 = vpack.c.b16 %v1137, %v1135
    %v1632 = vpack.c.b16 %v1140, %v1138
    %v1633 = vpack.c.b16 %v1141, %v1139
    %v1634 = vpack.c.b16 %v1144, %v1142
    %v1635 = vpack.c.b16 %v1145, %v1143
    %v1636 = vpack.c.b16 %v1148, %v1146
    %v1637 = vpack.c.b16 %v1149, %v1147
    %v1638 = vpack.c.b16 %v1152, %v1150
    %v1639 = vpack.c.b16 %v1153, %v1151
    %v1640 = vpack.c.b16 %v1156, %v1154
    %v1641 = vpack.c.b16 %v1157, %v1155
    %v1642 = vpack.c.b16 %v1160, %v1158
    %v1643 = vpack.c.b16 %v1161, %v1159
    %v1644 = vpack.c.b16 %v1164, %v1162
    %v1645 = vpack.c.b16 %v1165, %v1163
    %v1646 = vpack.c.b16 %v1168, %v1166
    %v1647 = vpack.c.b16 %v1169, %v1167
    %v1648 = vpack.c.b16 %v1172, %v1170
    %v1649 = vpack.c.b16 %v1173, %v1171
    %v1650 = vpack.c.b16 %v1176, %v1174
    %v1651 = vpack.c.b16 %v1177, %v1175
    %v1652 = vpack.c.b16 %v1180, %v1178
    %v1653 = vpack.c.b16 %v1181, %v1179
    %v1654 = vpack.c.b16 %v1184, %v1182
    %v1655 = vpack.c.b16 %v1185, %v1183
    %v1656 = vpack.c.b16 %v1188, %v1186
    %v1657 = vpack.c.b16 %v1189, %v1187
    %v1658 = vpack.c.b16 %v1192, %v1190
    %v1659 = vpack.c.b16 %v1193, %v1191
    %v1660 = vpack.c.b16 %v1196, %v1194
    %v1661 = vpack.c.b16 %v1197, %v1195
    %v1662 = vpack.c.b16 %v1200, %v1198
    %v1663 = vpack.c.b16 %v1201, %v1199
    %v1664 = vpack.c.b16 %v1204, %v1202
    %v1665 = vpack.c.b16 %v1205, %v1203
    %v1666 = vpack.c.b16 %v1208, %v1206
    %v1667 = vpack.c.b16 %v1209, %v1207
    %v1668 = vpack.c.b16 %v1212, %v1210
    %v1669 = vpack.c.b16 %v1213, %v1211
    %v1670 = vpack.c.b16 %v1216, %v1214
    %v1671 = vpack.c.b16 %v1217, %v1215
    %v1672 = vpack.c.b16 %v1220, %v1218
    %v1673 = vpack.c.b16 %v1221, %v1219
    %v1674 = vpack.c.b16 %v1224, %v1222
    %v1675 = vpack.c.b16 %v1225, %v1223
    %v1676 = vpack.c.b16 %v1228, %v1226
    %v1677 = vpack.c.b16 %v1229, %v1227
    %v1678 = vpack.c.b16 %v1232, %v1230
    %v1679 = vpack.c.b16 %v1233, %v1231
    %v1680 = vpack.c.b16 %v1236, %v1234
    %v1681 = vpack.c.b16 %v1237, %v1235
    %v1682 = vpack.c.b16 %v1240, %v1238
    %v1683 = vpack.c.b16 %v1241, %v1239
    %v1684 = vpack.c.b16 %v1244, %v1242
    %v1685 = vpack.c.b16 %v1245, %v1243
    %v1686 = vpack.c.b16 %v1248, %v1246
    %v1687 = vpack.c.b16 %v1249, %v1247
    %v1688 = vpack.c.b16 %v1252, %v1250
    %v1689 = vpack.c.b16 %v1253, %v1251
    %v1690 = vpack.c.b16 %v1256, %v1254
    %v1691 = vpack.c.b16 %v1257, %v1255
    %v1692 = vpack.c.b16 %v1260, %v1258
    %v1693 = vpack.c.b16 %v1261, %v1259
    %v1694 = vpack.c.b16 %v1264, %v1262
    %v1695 = vpack.c.b16 %v1265, %v1263
    %v1696 = vpack.c.b16 %v1268, %v1266
    %v1697 = vpack.c.b16 %v1269, %v1267
    %v1698 = vpack.c.b16 %v1272, %v1270
    %v1699 = vpack.c.b16 %v1273, %v1271
    %v1700 = vpack.c.b16 %v1276, %v1274
    %v1701 = vpack.c.b16 %v1277, %v1275
    %v1702 = vpack.c.b16 %v1280, %v1278
    %v1703 = vpack.c.b16 %v1281, %v1279
    %v1704 = vpack.c.b16 %v1284, %v1282
    %v1705 = vpack.c.b16 %v1285, %v1283
    %v1706 = vpack.c.b16 %v1288, %v1286
    %v1707 = vpack.c.b16 %v1289, %v1287
    %v1708 = vpack.c.b16 %v1292, %v1290
    %v1709 = vpack.c.b16 %v1293, %v1291
    %v1710 = vpack.c.b16 %v1296, %v1294
    %v1711 = vpack.c.b16 %v1297, %v1295
    %v1712 = vpack.c.b16 %v1300, %v1298
    %v1713 = vpack.c.b16 %v1301, %v1299
    %v1714 = vpack.c.b16 %v1304, %v1302
    %v1715 = vpack.c.b16 %v1305, %v1303
    %v1716 = vpack.c.b16 %v1308, %v1306
    %v1717 = vpack.c.b16 %v1309, %v1307
    %v1718 = vpack.c.b16 %v1312, %v1310
    %v1719 = vpack.c.b16 %v1313, %v1311
    %v1720 = vpack.c.b16 %v1316, %v1314
    %v1721 = vpack.c.b16 %v1317, %v1315
    %v1722 = vpack.c.b16 %v1320, %v1318
    %v1723 = vpack.c.b16 %v1321, %v1319
    %v1724 = vpack.c.b16 %v1324, %v1322
    %v1725 = vpack.c.b16 %v1325, %v1323
    %v1726 = vpack.c.b16 %v1328, %v1326
    %v1727 = vpack.c.b16 %v1329, %v1327
    %v1728 = vpack.c.b16 %v1332, %v1330
    %v1729 = vpack.c.b16 %v1333, %v1331
    %v1730 = vpack.c.b16 %v1336, %v1334
    %v1731 = vpack.c.b16 %v1337, %v1335
    %v1732 = vpack.c.b16 %v1340, %v1338
    %v1733 = vpack.c.b16 %v1341, %v1339
    %v1734 = vpack.c.b16 %v1344, %v1342
    %v1735 = vpack.c.b16 %v1345, %v1343
    %v1736 = vpack.c.b16 %v1348, %v1346
    %v1737 = vpack.c.b16 %v1349, %v1347
    %v1738 = vpack.c.b16 %v1352, %v1350
    %v1739 = vpack.c.b16 %v1353, %v1351
    %v1740 = vpack.c.b16 %v1356, %v1354
    %v1741 = vpack.c.b16 %v1357, %v1355
    %v1742 = vpack.c.b16 %v1360, %v1358
    %v1743 = vpack.c.b16 %v1361, %v1359
    %v1744 = vpack.c.b16 %v1364, %v1362
    %v1745 = vpack.c.b16 %v1365, %v1363
    %v1746 = vpack.c.b16 %v1368, %v1366
    %v1747 = vpack.c.b16 %v1369, %v1367
    %v1748 = vpack.c.b16 %v1372, %v1370
    %v1749 = vpack.c.b16 %v1373, %v1371
    %v1750 = vpack.c.b16 %v1376, %v1374
    %v1751 = vpack.c.b16 %v1377, %v1375
    %v1752 = vpack.c.b16 %v1380, %v1378
    %v1753 = vpack.c.b16 %v1381, %v1379
    %v1754 = vpack.c.b16 %v1384, %v1382
    %v1755 = vpack.c.b16 %v1385, %v1383
    %v1756 = vpack.c.b16 %v1388, %v1386
    %v1757 = vpack.c.b16 %v1389, %v1387
    %v1758 = vpack.c.b16 %v1392, %v1390
    %v1759 = vpack.c.b16 %v1393, %v1391
    %v1760 = vpack.c.b16 %v1396, %v1394
    %v1761 = vpack.c.b16 %v1397, %v1395
    %v1762 = vpack.c.b16 %v1400, %v1398
    %v1763 = vpack.c.b16 %v1401, %v1399
    %v1764 = vpack.c.b16 %v1404, %v1402
    %v1765 = vpack.c.b16 %v1405, %v1403
    %v1766 = vpack.c.b16 %v1408, %v1406
    %v1767 = vpack.c.b16 %v1409, %v1407
    %v1768 = vpack.c.b16 %v1412, %v1410
    %v1769 = vpack.c.b16 %v1413, %v1411
    %v1770 = vpack.c.b16 %v1416, %v1414
    %v1771 = vpack.c.b16 %v1417, %v1415
    %v1772 = vpack.c.b16 %v1420, %v1418
    %v1773 = vpack.c.b16 %v1421, %v1419
    %v1774 = vpack.c.b16 %v1424, %v1422
    %v1775 = vpack.c.b16 %v1425, %v1423
    %v1776 = vpack.c.b16 %v1428, %v1426
    %v1777 = vpack.c.b16 %v1429, %v1427
    %v1778 = vpack.c.b16 %v1432, %v1430
    %v1779 = vpack.c.b16 %v1433, %v1431
    %v1780 = vpack.c.b16 %v1436, %v1434
    %v1781 = vpack.c.b16 %v1437, %v1435
    %v1782 = vpack.c.b16 %v1440, %v1438
    %v1783 = vpack.c.b16 %v1441, %v1439
    %v1784 = vpack.c.b16 %v1444, %v1442
    %v1785 = vpack.c.b16 %v1445, %v1443
    %v1786 = vpack.c.b16 %v1448, %v1446
    %v1787 = vpack.c.b16 %v1449, %v1447
    %v1788 = vpack.c.b16 %v1452, %v1450
    %v1789 = vpack.c.b16 %v1453, %v1451
    %v1790 = vpack.c.b16 %v1456, %v1454
    %v1791 = vpack.c.b16 %v1457, %v1455
    %v1792 = vpack.c.b16 %v1460, %v1458
    %v1793 = vpack.c.b16 %v1461, %v1459
    %v1794 = vpack.c.b16 %v1464, %v1462
    %v1795 = vpack.c.b16 %v1465, %v1463
    %v1796 = vpack.c.b16 %v1468, %v1466
    %v1797 = vpack.c.b16 %v1469, %v1467
    %v1798 = vpack.c.b16 %v1472, %v1470
    %v1799 = vpack.c.b16 %v1473, %v1471
    %v1800 = vpack.c.b16 %v1476, %v1474
    %v1801 = vpack.c.b16 %v1477, %v1475
    %v1802 = vpack.c.b16 %v1480, %v1478
    %v1803 = vpack.c.b16 %v1481, %v1479
    %v1804 = vpack.c.b16 %v1484, %v1482
    %v1805 = vpack.c.b16 %v1485, %v1483
    %v1806 = vpack.c.b16 %v1488, %v1486
    %v1807 = vpack.c.b16 %v1489, %v1487
    %v1808 = vpack.c.b16 %v1492, %v1490
    %v1809 = vpack.c.b16 %v1493, %v1491
    %v1810 = vpack.c.b16 %v1496, %v1494
    %v1811 = vpack.c.b16 %v1497, %v1495
    %v1812 = vpack.c.b16 %v1500, %v1498
    %v1813 = vpack.c.b16 %v1501, %v1499
    %v1814 = vpack.c.b16 %v1504, %v1502
    %v1815 = vpack.c.b16 %v1505, %v1503
    %v1816 = vpack.c.b16 %v1508, %v1506
    %v1817 = vpack.c.b16 %v1509, %v1507
    %v1818 = vpack.c.b16 %v1512, %v1510
    %v1819 = vpack.c.b16 %v1513, %v1511
    %v1820 = vpack.c.b16 %v1516, %v1514
    %v1821 = vpack.c.b16 %v1517, %v1515
    %v1822 = vpack.c.b16 %v1520, %v1518
    %v1823 = vpack.c.b16 %v1521, %v1519
    %v1824 = vpack.c.b16 %v1524, %v1522
    %v1825 = vpack.c.b16 %v1525, %v1523
    %v1826 = vpack.c.b16 %v1528, %v1526
    %v1827 = vpack.c.b16 %v1529, %v1527
    %v1828 = vpack.c.b16 %v1532, %v1530
    %v1829 = vpack.c.b16 %v1533, %v1531
    %v1830 = vpack.c.b16 %v1536, %v1534
    %v1831 = vpack.c.b16 %v1537, %v1535
    %v1832 = vpack.c.b16 %v1540, %v1538
    %v1833 = vpack.c.b16 %v1541, %v1539
    %v1834 = vpack.c.b16 %v1544, %v1542
    %v1835 = vpack.c.b16 %v1545, %v1543
    %v1836 = vpack.c.b16 %v1548, %v1546
    %v1837 = vpack.c.b16 %v1549, %v1547
    %2126 = vmatprep.subr.bf16.mxu0 %v1551
    %2127 = vmatpush1.bf16.msra.mxu0 %v1550
    %2128 = vmatprep.subr.bf16.mxu0 %v1553
    %2129 = vmatpush1.bf16.msra.mxu0 %v1552
    %2130 = vmatprep.subr.bf16.mxu0 %v1555
    %2131 = vmatpush1.bf16.msra.mxu0 %v1554
    %2132 = vmatprep.subr.bf16.mxu0 %v1557
    %2133 = vmatpush1.bf16.msra.mxu0 %v1556
    %2134 = vmatprep.subr.bf16.mxu0 %v1559
    %2135 = vmatpush1.bf16.msra.mxu0 %v1558
    %2136 = vmatprep.subr.bf16.mxu0 %v1561
    %2137 = vmatpush1.bf16.msra.mxu0 %v1560
    %2138 = vmatprep.subr.bf16.mxu0 %v1563
    %2139 = vmatpush1.bf16.msra.mxu0 %v1562
    %2140 = vmatprep.subr.bf16.mxu0 %v1565
    %2141 = vmatpush1.bf16.msra.mxu0 %v1564
    %2142 = vmatprep.subr.bf16.mxu0 %v1567
    %2143 = vmatpush1.bf16.msra.mxu0 %v1566
    %2144 = vmatprep.subr.bf16.mxu0 %v1569
    %2145 = vmatpush1.bf16.msra.mxu0 %v1568
    %2146 = vmatprep.subr.bf16.mxu0 %v1571
    %2147 = vmatpush1.bf16.msra.mxu0 %v1570
    %2148 = vmatprep.subr.bf16.mxu0 %v1573
    %2149 = vmatpush1.bf16.msra.mxu0 %v1572
    %2150 = vmatprep.subr.bf16.mxu0 %v1575
    %2151 = vmatpush1.bf16.msra.mxu0 %v1574
    %2152 = vmatprep.subr.bf16.mxu0 %v1577
    %2153 = vmatpush1.bf16.msra.mxu0 %v1576
    %2154 = vmatprep.subr.bf16.mxu0 %v1579
    %2155 = vmatpush1.bf16.msra.mxu0 %v1578
    %2156 = vmatprep.subr.bf16.mxu0 %v1581
    %2157 = vmatpush1.bf16.msra.mxu0 %v1580
    %2158 = vmatprep.mubr.bf16.mxu0 %v369
    %2159 = vmatmul.mubr.bf16.gmra.mrb[0].mxu0 %v368
    %v2160 = vpop.f32.mrb[0].mxu0
    %v2161 = vadd.f32 %v679, %v2160
    %v2162 = vpop.f32.mrb[0].mxu0
    %v2163 = vadd.f32 %v683, %v2162
    %v2164 = vpop.f32.mrb[0].mxu0
    %v2165 = vpop.f32.mrb[0].mxu0
    %2166 = vdwg.mxu0
    %2167 = vmatprep.subr.bf16.mxu0 %v1583
    %2168 = vmatpush1.bf16.msra.mxu0 %v1582
    %2169 = vmatprep.subr.bf16.mxu0 %v1585
    %2170 = vmatpush1.bf16.msra.mxu0 %v1584
    %2171 = vmatprep.subr.bf16.mxu0 %v1587
    %2172 = vmatpush1.bf16.msra.mxu0 %v1586
    %2173 = vmatprep.subr.bf16.mxu0 %v1589
    %2174 = vmatpush1.bf16.msra.mxu0 %v1588
    %2175 = vmatprep.subr.bf16.mxu0 %v1591
    %2176 = vmatpush1.bf16.msra.mxu0 %v1590
    %2177 = vmatprep.subr.bf16.mxu0 %v1593
    %2178 = vmatpush1.bf16.msra.mxu0 %v1592
    %2179 = vmatprep.subr.bf16.mxu0 %v1595
    %2180 = vmatpush1.bf16.msra.mxu0 %v1594
    %2181 = vmatprep.subr.bf16.mxu0 %v1597
    %2182 = vmatpush1.bf16.msra.mxu0 %v1596
    %2183 = vmatprep.subr.bf16.mxu0 %v1599
    %2184 = vmatpush1.bf16.msra.mxu0 %v1598
    %2185 = vmatprep.subr.bf16.mxu0 %v1601
    %2186 = vmatpush1.bf16.msra.mxu0 %v1600
    %2187 = vmatprep.subr.bf16.mxu0 %v1603
    %2188 = vmatpush1.bf16.msra.mxu0 %v1602
    %2189 = vmatprep.subr.bf16.mxu0 %v1605
    %2190 = vmatpush1.bf16.msra.mxu0 %v1604
    %2191 = vmatprep.subr.bf16.mxu0 %v1607
    %2192 = vmatpush1.bf16.msra.mxu0 %v1606
    %2193 = vmatprep.subr.bf16.mxu0 %v1609
    %2194 = vmatpush1.bf16.msra.mxu0 %v1608
    %2195 = vmatprep.subr.bf16.mxu0 %v1611
    %2196 = vmatpush1.bf16.msra.mxu0 %v1610
    %2197 = vmatprep.subr.bf16.mxu0 %v1613
    %2198 = vmatpush1.bf16.msra.mxu0 %v1612
    %2199 = vmatprep.mubr.bf16.mxu0 %v371
    %2200 = vmatmul.mubr.bf16.gmra.mrb[0].mxu0 %v370
    %v2201 = vpop.f32.mrb[0].mxu0
    %v2202 = vadd.f32 %v2161, %v2201
    %v2203 = vpop.f32.mrb[0].mxu0
    %v2204 = vadd.f32 %v2163, %v2203
    %v2205 = vpop.f32.mrb[0].mxu0
    %v2206 = vpop.f32.mrb[0].mxu0
    %2207 = vdwg.mxu0
    %2208 = vmatprep.subr.bf16.mxu0 %v1615
    %2209 = vmatpush1.bf16.msra.mxu0 %v1614
    %2210 = vmatprep.subr.bf16.mxu0 %v1617
    %2211 = vmatpush1.bf16.msra.mxu0 %v1616
    %2212 = vmatprep.subr.bf16.mxu0 %v1619
    %2213 = vmatpush1.bf16.msra.mxu0 %v1618
    %2214 = vmatprep.subr.bf16.mxu0 %v1621
    %2215 = vmatpush1.bf16.msra.mxu0 %v1620
    %2216 = vmatprep.subr.bf16.mxu0 %v1623
    %2217 = vmatpush1.bf16.msra.mxu0 %v1622
    %2218 = vmatprep.subr.bf16.mxu0 %v1625
    %2219 = vmatpush1.bf16.msra.mxu0 %v1624
    %2220 = vmatprep.subr.bf16.mxu0 %v1627
    %2221 = vmatpush1.bf16.msra.mxu0 %v1626
    %2222 = vmatprep.subr.bf16.mxu0 %v1629
    %2223 = vmatpush1.bf16.msra.mxu0 %v1628
    %2224 = vmatprep.subr.bf16.mxu0 %v1631
    %2225 = vmatpush1.bf16.msra.mxu0 %v1630
    %2226 = vmatprep.subr.bf16.mxu0 %v1633
    %2227 = vmatpush1.bf16.msra.mxu0 %v1632
    %2228 = vmatprep.subr.bf16.mxu0 %v1635
    %2229 = vmatpush1.bf16.msra.mxu0 %v1634
    %2230 = vmatprep.subr.bf16.mxu0 %v1637
    %2231 = vmatpush1.bf16.msra.mxu0 %v1636
    %2232 = vmatprep.subr.bf16.mxu0 %v1639
    %2233 = vmatpush1.bf16.msra.mxu0 %v1638
    %2234 = vmatprep.subr.bf16.mxu0 %v1641
    %2235 = vmatpush1.bf16.msra.mxu0 %v1640
    %2236 = vmatprep.subr.bf16.mxu0 %v1643
    %2237 = vmatpush1.bf16.msra.mxu0 %v1642
    %2238 = vmatprep.subr.bf16.mxu0 %v1645
    %2239 = vmatpush1.bf16.msra.mxu0 %v1644
    %2240 = vmatprep.mubr.bf16.mxu0 %v373
    %2241 = vmatmul.mubr.bf16.gmra.mrb[0].mxu0 %v372
    %v2242 = vpop.f32.mrb[0].mxu0
    %v2243 = vadd.f32 %v2202, %v2242
    %v2244 = vpop.f32.mrb[0].mxu0
    %v2245 = vadd.f32 %v2204, %v2244
    %v2246 = vpop.f32.mrb[0].mxu0
    %v2247 = vpop.f32.mrb[0].mxu0
    %2248 = vdwg.mxu0
    %2249 = vmatprep.subr.bf16.mxu0 %v1647
    %2250 = vmatpush1.bf16.msra.mxu0 %v1646
    %2251 = vmatprep.subr.bf16.mxu0 %v1649
    %2252 = vmatpush1.bf16.msra.mxu0 %v1648
    %2253 = vmatprep.subr.bf16.mxu0 %v1651
    %2254 = vmatpush1.bf16.msra.mxu0 %v1650
    %2255 = vmatprep.subr.bf16.mxu0 %v1653
    %2256 = vmatpush1.bf16.msra.mxu0 %v1652
    %2257 = vmatprep.subr.bf16.mxu0 %v1655
    %2258 = vmatpush1.bf16.msra.mxu0 %v1654
    %2259 = vmatprep.subr.bf16.mxu0 %v1657
    %2260 = vmatpush1.bf16.msra.mxu0 %v1656
    %2261 = vmatprep.subr.bf16.mxu0 %v1659
    %2262 = vmatpush1.bf16.msra.mxu0 %v1658
    %2263 = vmatprep.subr.bf16.mxu0 %v1661
    %2264 = vmatpush1.bf16.msra.mxu0 %v1660
    %2265 = vmatprep.subr.bf16.mxu0 %v1663
    %2266 = vmatpush1.bf16.msra.mxu0 %v1662
    %2267 = vmatprep.subr.bf16.mxu0 %v1665
    %2268 = vmatpush1.bf16.msra.mxu0 %v1664
    %2269 = vmatprep.subr.bf16.mxu0 %v1667
    %2270 = vmatpush1.bf16.msra.mxu0 %v1666
    %2271 = vmatprep.subr.bf16.mxu0 %v1669
    %2272 = vmatpush1.bf16.msra.mxu0 %v1668
    %2273 = vmatprep.subr.bf16.mxu0 %v1671
    %2274 = vmatpush1.bf16.msra.mxu0 %v1670
    %2275 = vmatprep.subr.bf16.mxu0 %v1673
    %2276 = vmatpush1.bf16.msra.mxu0 %v1672
    %2277 = vmatprep.subr.bf16.mxu0 %v1675
    %2278 = vmatpush1.bf16.msra.mxu0 %v1674
    %2279 = vmatprep.subr.bf16.mxu0 %v1677
    %2280 = vmatpush1.bf16.msra.mxu0 %v1676
    %2281 = vmatprep.mubr.bf16.mxu0 %v375
    %2282 = vmatmul.mubr.bf16.gmra.mrb[0].mxu0 %v374
    %v2283 = vpop.f32.mrb[0].mxu0
    %v2284 = vadd.f32 %v2243, %v2283
    %v2285 = vpop.f32.mrb[0].mxu0
    %v2286 = vadd.f32 %v2245, %v2285
    %v2287 = vpop.f32.mrb[0].mxu0
    %v2288 = vpop.f32.mrb[0].mxu0
    %2289 = vdwg.mxu0
    %2290 = vmatprep.subr.bf16.mxu0 %v1679
    %2291 = vmatpush1.bf16.msra.mxu0 %v1678
    %2292 = vmatprep.subr.bf16.mxu0 %v1681
    %2293 = vmatpush1.bf16.msra.mxu0 %v1680
    %2294 = vmatprep.subr.bf16.mxu0 %v1683
    %2295 = vmatpush1.bf16.msra.mxu0 %v1682
    %2296 = vmatprep.subr.bf16.mxu0 %v1685
    %2297 = vmatpush1.bf16.msra.mxu0 %v1684
    %2298 = vmatprep.subr.bf16.mxu0 %v1687
    %2299 = vmatpush1.bf16.msra.mxu0 %v1686
    %2300 = vmatprep.subr.bf16.mxu0 %v1689
    %2301 = vmatpush1.bf16.msra.mxu0 %v1688
    %2302 = vmatprep.subr.bf16.mxu0 %v1691
    %2303 = vmatpush1.bf16.msra.mxu0 %v1690
    %2304 = vmatprep.subr.bf16.mxu0 %v1693
    %2305 = vmatpush1.bf16.msra.mxu0 %v1692
    %2306 = vmatprep.subr.bf16.mxu0 %v1695
    %2307 = vmatpush1.bf16.msra.mxu0 %v1694
    %2308 = vmatprep.subr.bf16.mxu0 %v1697
    %2309 = vmatpush1.bf16.msra.mxu0 %v1696
    %2310 = vmatprep.subr.bf16.mxu0 %v1699
    %2311 = vmatpush1.bf16.msra.mxu0 %v1698
    %2312 = vmatprep.subr.bf16.mxu0 %v1701
    %2313 = vmatpush1.bf16.msra.mxu0 %v1700
    %2314 = vmatprep.subr.bf16.mxu0 %v1703
    %2315 = vmatpush1.bf16.msra.mxu0 %v1702
    %2316 = vmatprep.subr.bf16.mxu0 %v1705
    %2317 = vmatpush1.bf16.msra.mxu0 %v1704
    %2318 = vmatprep.subr.bf16.mxu0 %v1707
    %2319 = vmatpush1.bf16.msra.mxu0 %v1706
    %2320 = vmatprep.subr.bf16.mxu0 %v1709
    %2321 = vmatpush1.bf16.msra.mxu0 %v1708
    %2322 = vmatprep.mubr.bf16.mxu0 %v377
    %2323 = vmatmul.mubr.bf16.gmra.mrb[0].mxu0 %v376
    %v2324 = vpop.f32.mrb[0].mxu0
    %v2325 = vadd.f32 %v2284, %v2324
    %v2326 = vpop.f32.mrb[0].mxu0
    %v2327 = vadd.f32 %v2286, %v2326
    %v2328 = vpop.f32.mrb[0].mxu0
    %v2329 = vpop.f32.mrb[0].mxu0
    %2330 = vdwg.mxu0
    %2331 = vmatprep.subr.bf16.mxu0 %v1711
    %2332 = vmatpush1.bf16.msra.mxu0 %v1710
    %2333 = vmatprep.subr.bf16.mxu0 %v1713
    %2334 = vmatpush1.bf16.msra.mxu0 %v1712
    %2335 = vmatprep.subr.bf16.mxu0 %v1715
    %2336 = vmatpush1.bf16.msra.mxu0 %v1714
    %2337 = vmatprep.subr.bf16.mxu0 %v1717
    %2338 = vmatpush1.bf16.msra.mxu0 %v1716
    %2339 = vmatprep.subr.bf16.mxu0 %v1719
    %2340 = vmatpush1.bf16.msra.mxu0 %v1718
    %2341 = vmatprep.subr.bf16.mxu0 %v1721
    %2342 = vmatpush1.bf16.msra.mxu0 %v1720
    %2343 = vmatprep.subr.bf16.mxu0 %v1723
    %2344 = vmatpush1.bf16.msra.mxu0 %v1722
    %2345 = vmatprep.subr.bf16.mxu0 %v1725
    %2346 = vmatpush1.bf16.msra.mxu0 %v1724
    %2347 = vmatprep.subr.bf16.mxu0 %v1727
    %2348 = vmatpush1.bf16.msra.mxu0 %v1726
    %2349 = vmatprep.subr.bf16.mxu0 %v1729
    %2350 = vmatpush1.bf16.msra.mxu0 %v1728
    %2351 = vmatprep.subr.bf16.mxu0 %v1731
    %2352 = vmatpush1.bf16.msra.mxu0 %v1730
    %2353 = vmatprep.subr.bf16.mxu0 %v1733
    %2354 = vmatpush1.bf16.msra.mxu0 %v1732
    %2355 = vmatprep.subr.bf16.mxu0 %v1735
    %2356 = vmatpush1.bf16.msra.mxu0 %v1734
    %2357 = vmatprep.subr.bf16.mxu0 %v1737
    %2358 = vmatpush1.bf16.msra.mxu0 %v1736
    %2359 = vmatprep.subr.bf16.mxu0 %v1739
    %2360 = vmatpush1.bf16.msra.mxu0 %v1738
    %2361 = vmatprep.subr.bf16.mxu0 %v1741
    %2362 = vmatpush1.bf16.msra.mxu0 %v1740
    %2363 = vmatprep.mubr.bf16.mxu0 %v379
    %2364 = vmatmul.mubr.bf16.gmra.mrb[0].mxu0 %v378
    %v2365 = vpop.f32.mrb[0].mxu0
    %v2366 = vadd.f32 %v2325, %v2365
    %v2367 = vpop.f32.mrb[0].mxu0
    %v2368 = vadd.f32 %v2327, %v2367
    %v2369 = vpop.f32.mrb[0].mxu0
    %v2370 = vpop.f32.mrb[0].mxu0
    %2371 = vdwg.mxu0
    %2372 = vmatprep.subr.bf16.mxu0 %v1743
    %2373 = vmatpush1.bf16.msra.mxu0 %v1742
    %2374 = vmatprep.subr.bf16.mxu0 %v1745
    %2375 = vmatpush1.bf16.msra.mxu0 %v1744
    %2376 = vmatprep.subr.bf16.mxu0 %v1747
    %2377 = vmatpush1.bf16.msra.mxu0 %v1746
    %2378 = vmatprep.subr.bf16.mxu0 %v1749
    %2379 = vmatpush1.bf16.msra.mxu0 %v1748
    %2380 = vmatprep.subr.bf16.mxu0 %v1751
    %2381 = vmatpush1.bf16.msra.mxu0 %v1750
    %2382 = vmatprep.subr.bf16.mxu0 %v1753
    %2383 = vmatpush1.bf16.msra.mxu0 %v1752
    %2384 = vmatprep.subr.bf16.mxu0 %v1755
    %2385 = vmatpush1.bf16.msra.mxu0 %v1754
    %2386 = vmatprep.subr.bf16.mxu0 %v1757
    %2387 = vmatpush1.bf16.msra.mxu0 %v1756
    %2388 = vmatprep.subr.bf16.mxu0 %v1759
    %2389 = vmatpush1.bf16.msra.mxu0 %v1758
    %2390 = vmatprep.subr.bf16.mxu0 %v1761
    %2391 = vmatpush1.bf16.msra.mxu0 %v1760
    %2392 = vmatprep.subr.bf16.mxu0 %v1763
    %2393 = vmatpush1.bf16.msra.mxu0 %v1762
    %2394 = vmatprep.subr.bf16.mxu0 %v1765
    %2395 = vmatpush1.bf16.msra.mxu0 %v1764
    %2396 = vmatprep.subr.bf16.mxu0 %v1767
    %2397 = vmatpush1.bf16.msra.mxu0 %v1766
    %2398 = vmatprep.subr.bf16.mxu0 %v1769
    %2399 = vmatpush1.bf16.msra.mxu0 %v1768
    %2400 = vmatprep.subr.bf16.mxu0 %v1771
    %2401 = vmatpush1.bf16.msra.mxu0 %v1770
    %2402 = vmatprep.subr.bf16.mxu0 %v1773
    %2403 = vmatpush1.bf16.msra.mxu0 %v1772
    %2404 = vmatprep.mubr.bf16.mxu0 %v381
    %2405 = vmatmul.mubr.bf16.gmra.mrb[0].mxu0 %v380
    %v2406 = vpop.f32.mrb[0].mxu0
    %v2407 = vadd.f32 %v2366, %v2406
    %v2408 = vpop.f32.mrb[0].mxu0
    %v2409 = vadd.f32 %v2368, %v2408
    %v2410 = vpop.f32.mrb[0].mxu0
    %v2411 = vpop.f32.mrb[0].mxu0
    %2412 = vdwg.mxu0
    %2413 = vmatprep.subr.bf16.mxu0 %v1775
    %2414 = vmatpush1.bf16.msra.mxu0 %v1774
    %2415 = vmatprep.subr.bf16.mxu0 %v1777
    %2416 = vmatpush1.bf16.msra.mxu0 %v1776
    %2417 = vmatprep.subr.bf16.mxu0 %v1779
    %2418 = vmatpush1.bf16.msra.mxu0 %v1778
    %2419 = vmatprep.subr.bf16.mxu0 %v1781
    %2420 = vmatpush1.bf16.msra.mxu0 %v1780
    %2421 = vmatprep.subr.bf16.mxu0 %v1783
    %2422 = vmatpush1.bf16.msra.mxu0 %v1782
    %2423 = vmatprep.subr.bf16.mxu0 %v1785
    %2424 = vmatpush1.bf16.msra.mxu0 %v1784
    %2425 = vmatprep.subr.bf16.mxu0 %v1787
    %2426 = vmatpush1.bf16.msra.mxu0 %v1786
    %2427 = vmatprep.subr.bf16.mxu0 %v1789
    %2428 = vmatpush1.bf16.msra.mxu0 %v1788
    %2429 = vmatprep.subr.bf16.mxu0 %v1791
    %2430 = vmatpush1.bf16.msra.mxu0 %v1790
    %2431 = vmatprep.subr.bf16.mxu0 %v1793
    %2432 = vmatpush1.bf16.msra.mxu0 %v1792
    %2433 = vmatprep.subr.bf16.mxu0 %v1795
    %2434 = vmatpush1.bf16.msra.mxu0 %v1794
    %2435 = vmatprep.subr.bf16.mxu0 %v1797
    %2436 = vmatpush1.bf16.msra.mxu0 %v1796
    %2437 = vmatprep.subr.bf16.mxu0 %v1799
    %2438 = vmatpush1.bf16.msra.mxu0 %v1798
    %2439 = vmatprep.subr.bf16.mxu0 %v1801
    %2440 = vmatpush1.bf16.msra.mxu0 %v1800
    %2441 = vmatprep.subr.bf16.mxu0 %v1803
    %2442 = vmatpush1.bf16.msra.mxu0 %v1802
    %2443 = vmatprep.subr.bf16.mxu0 %v1805
    %2444 = vmatpush1.bf16.msra.mxu0 %v1804
    %2445 = vmatprep.mubr.bf16.mxu0 %v383
    %2446 = vmatmul.mubr.bf16.gmra.mrb[0].mxu0 %v382
    %v2447 = vpop.f32.mrb[0].mxu0
    %v2448 = vadd.f32 %v2407, %v2447
    %v2449 = vpop.f32.mrb[0].mxu0
    %v2450 = vadd.f32 %v2409, %v2449
    %v2451 = vpop.f32.mrb[0].mxu0
    %v2452 = vpop.f32.mrb[0].mxu0
    %2453 = vdwg.mxu0
    %2454 = vmatprep.subr.bf16.mxu0 %v1807
    %2455 = vmatpush1.bf16.msra.mxu0 %v1806
    %2456 = vmatprep.subr.bf16.mxu0 %v1809
    %2457 = vmatpush1.bf16.msra.mxu0 %v1808
    %2458 = vmatprep.subr.bf16.mxu0 %v1811
    %2459 = vmatpush1.bf16.msra.mxu0 %v1810
    %2460 = vmatprep.subr.bf16.mxu0 %v1813
    %2461 = vmatpush1.bf16.msra.mxu0 %v1812
    %2462 = vmatprep.subr.bf16.mxu0 %v1815
    %2463 = vmatpush1.bf16.msra.mxu0 %v1814
    %2464 = vmatprep.subr.bf16.mxu0 %v1817
    %2465 = vmatpush1.bf16.msra.mxu0 %v1816
    %2466 = vmatprep.subr.bf16.mxu0 %v1819
    %2467 = vmatpush1.bf16.msra.mxu0 %v1818
    %2468 = vmatprep.subr.bf16.mxu0 %v1821
    %2469 = vmatpush1.bf16.msra.mxu0 %v1820
    %2470 = vmatprep.subr.bf16.mxu0 %v1823
    %2471 = vmatpush1.bf16.msra.mxu0 %v1822
    %2472 = vmatprep.subr.bf16.mxu0 %v1825
    %2473 = vmatpush1.bf16.msra.mxu0 %v1824
    %2474 = vmatprep.subr.bf16.mxu0 %v1827
    %2475 = vmatpush1.bf16.msra.mxu0 %v1826
    %2476 = vmatprep.subr.bf16.mxu0 %v1829
    %2477 = vmatpush1.bf16.msra.mxu0 %v1828
    %2478 = vmatprep.subr.bf16.mxu0 %v1831
    %2479 = vmatpush1.bf16.msra.mxu0 %v1830
    %2480 = vmatprep.subr.bf16.mxu0 %v1833
    %2481 = vmatpush1.bf16.msra.mxu0 %v1832
    %2482 = vmatprep.subr.bf16.mxu0 %v1835
    %2483 = vmatpush1.bf16.msra.mxu0 %v1834
    %2484 = vmatprep.subr.bf16.mxu0 %v1837
    %2485 = vmatpush1.bf16.msra.mxu0 %v1836
    %2486 = vmatprep.mubr.bf16.mxu0 %v385
    %2487 = vmatmul.mubr.bf16.gmra.mrb[0].mxu0 %v384
    %v2488 = vpop.f32.mrb[0].mxu0
    %v2489 = vadd.f32 %v2448, %v2488
    %v2490 = vpop.f32.mrb[0].mxu0
    %v2491 = vadd.f32 %v2450, %v2490
    %v2492 = vpop.f32.mrb[0].mxu0
    %v2493 = vpop.f32.mrb[0].mxu0
    %2494 = vdwg.mxu0
    %v2495 = vmax.f32 %v2489, 0.0
    %v2496 = vmax.f32 %v2491, 0.0
    %v2497 = vpack.c.bf16 %v2495, %v2495
    %v2498 = vpack.c.bf16 %v2496, %v2496
    %v2499 = vld [vmem:[#allocation8] sm:$0xf]
    %v2500 = vld [vmem:[#allocation8 + $0x4] sm:$0xf]
    %v2501 = vld [vmem:[#allocation8 + $0x8] sm:$0xf]
    %v2502 = vld [vmem:[#allocation8 + $0xc] sm:$0xf]
    %v2503 = vld [vmem:[#allocation8 + $0x10] sm:$0xf]
    %v2504 = vld [vmem:[#allocation8 + $0x14] sm:$0xf]
    %v2505 = vld [vmem:[#allocation8 + $0x18] sm:$0xf]
    %v2506 = vld [vmem:[#allocation8 + $0x1c] sm:$0xf]
    %v2507 = vld [vmem:[#allocation8 + $0x20] sm:$0xf]
    %v2508 = vld [vmem:[#allocation8 + $0x24] sm:$0xf]
    %v2509 = vld [vmem:[#allocation8 + $0x28] sm:$0xf]
    %v2510 = vld [vmem:[#allocation8 + $0x2c] sm:$0xf]
    %v2511 = vld [vmem:[#allocation8 + $0x30] sm:$0xf]
    %v2512 = vld [vmem:[#allocation8 + $0x34] sm:$0xf]
    %v2513 = vld [vmem:[#allocation8 + $0x38] sm:$0xf]
    %v2514 = vld [vmem:[#allocation8 + $0x3c] sm:$0xf]
    %v2515 = vld [vmem:[#allocation8 + $0x40] sm:$0xf]
    %v2516 = vld [vmem:[#allocation8 + $0x44] sm:$0xf]
    %v2517 = vld [vmem:[#allocation8 + $0x48] sm:$0xf]
    %v2518 = vld [vmem:[#allocation8 + $0x4c] sm:$0xf]
    %v2519 = vld [vmem:[#allocation8 + $0x50] sm:$0xf]
    %v2520 = vld [vmem:[#allocation8 + $0x54] sm:$0xf]
    %v2521 = vld [vmem:[#allocation8 + $0x58] sm:$0xf]
    %v2522 = vld [vmem:[#allocation8 + $0x5c] sm:$0xf]
    %v2523 = vld [vmem:[#allocation8 + $0x60] sm:$0xf]
    %v2524 = vld [vmem:[#allocation8 + $0x64] sm:$0xf]
    %v2525 = vld [vmem:[#allocation8 + $0x68] sm:$0xf]
    %v2526 = vld [vmem:[#allocation8 + $0x6c] sm:$0xf]
    %v2527 = vld [vmem:[#allocation8 + $0x70] sm:$0xf]
    %v2528 = vld [vmem:[#allocation8 + $0x74] sm:$0xf]
    %v2529 = vld [vmem:[#allocation8 + $0x78] sm:$0xf]
    %v2530 = vld [vmem:[#allocation8 + $0x7c] sm:$0xf]
    %v2531 = vld [vmem:[#allocation10] sm:$0x1]
    %v2533 = vlaneseq
    %v2534 = vshrl.u32 %v2533, 7
    %v2535 = vsub.s32 0, %v2534
    %v2536 = vrot.slane %v2531, %v2535
    %v2570 = vunpack.c.l.b16 %v2499
    %v2571 = vunpack.c.l.b16 %v2500
    %v2572 = vunpack.c.l.b16 %v2501
    %v2573 = vunpack.c.l.b16 %v2502
    %v2574 = vunpack.c.l.b16 %v2503
    %v2575 = vunpack.c.l.b16 %v2504
    %v2576 = vunpack.c.l.b16 %v2505
    %v2577 = vunpack.c.l.b16 %v2506
    %v2578 = vunpack.c.l.b16 %v2507
    %v2579 = vunpack.c.l.b16 %v2508
    %v2580 = vunpack.c.l.b16 %v2509
    %v2581 = vunpack.c.l.b16 %v2510
    %v2582 = vunpack.c.l.b16 %v2511
    %v2583 = vunpack.c.l.b16 %v2512
    %v2584 = vunpack.c.l.b16 %v2513
    %v2585 = vunpack.c.l.b16 %v2514
    %v2586 = vunpack.c.l.b16 %v2515
    %v2587 = vunpack.c.l.b16 %v2516
    %v2588 = vunpack.c.l.b16 %v2517
    %v2589 = vunpack.c.l.b16 %v2518
    %v2590 = vunpack.c.l.b16 %v2519
    %v2591 = vunpack.c.l.b16 %v2520
    %v2592 = vunpack.c.l.b16 %v2521
    %v2593 = vunpack.c.l.b16 %v2522
    %v2594 = vunpack.c.l.b16 %v2523
    %v2595 = vunpack.c.l.b16 %v2524
    %v2596 = vunpack.c.l.b16 %v2525
    %v2597 = vunpack.c.l.b16 %v2526
    %v2598 = vunpack.c.l.b16 %v2527
    %v2599 = vunpack.c.l.b16 %v2528
    %v2600 = vunpack.c.l.b16 %v2529
    %v2601 = vunpack.c.l.b16 %v2530
    %v2602 = vpack.c.b16 %v2571, %v2570
    %v2603 = vpack.c.b16 %v2573, %v2572
    %v2604 = vpack.c.b16 %v2575, %v2574
    %v2605 = vpack.c.b16 %v2577, %v2576
    %v2606 = vpack.c.b16 %v2579, %v2578
    %v2607 = vpack.c.b16 %v2581, %v2580
    %v2608 = vpack.c.b16 %v2583, %v2582
    %v2609 = vpack.c.b16 %v2585, %v2584
    %v2610 = vpack.c.b16 %v2587, %v2586
    %v2611 = vpack.c.b16 %v2589, %v2588
    %v2612 = vpack.c.b16 %v2591, %v2590
    %v2613 = vpack.c.b16 %v2593, %v2592
    %v2614 = vpack.c.b16 %v2595, %v2594
    %v2615 = vpack.c.b16 %v2597, %v2596
    %v2616 = vpack.c.b16 %v2599, %v2598
    %v2617 = vpack.c.b16 %v2601, %v2600
    %2634 = vmatprep.subr.bf16.mxu0 0
    %2635 = vmatpush1.bf16.msra.mxu0 %v2602
    %2636 = vmatprep.subr.bf16.mxu0 0
    %2637 = vmatpush1.bf16.msra.mxu0 %v2603
    %2638 = vmatprep.subr.bf16.mxu0 0
    %2639 = vmatpush1.bf16.msra.mxu0 %v2604
    %2640 = vmatprep.subr.bf16.mxu0 0
    %2641 = vmatpush1.bf16.msra.mxu0 %v2605
    %2642 = vmatprep.subr.bf16.mxu0 0
    %2643 = vmatpush1.bf16.msra.mxu0 %v2606
    %2644 = vmatprep.subr.bf16.mxu0 0
    %2645 = vmatpush1.bf16.msra.mxu0 %v2607
    %2646 = vmatprep.subr.bf16.mxu0 0
    %2647 = vmatpush1.bf16.msra.mxu0 %v2608
    %2648 = vmatprep.subr.bf16.mxu0 0
    %2649 = vmatpush1.bf16.msra.mxu0 %v2609
    %2650 = vmatprep.subr.bf16.mxu0 0
    %2651 = vmatpush1.bf16.msra.mxu0 %v2610
    %2652 = vmatprep.subr.bf16.mxu0 0
    %2653 = vmatpush1.bf16.msra.mxu0 %v2611
    %2654 = vmatprep.subr.bf16.mxu0 0
    %2655 = vmatpush1.bf16.msra.mxu0 %v2612
    %2656 = vmatprep.subr.bf16.mxu0 0
    %2657 = vmatpush1.bf16.msra.mxu0 %v2613
    %2658 = vmatprep.subr.bf16.mxu0 0
    %2659 = vmatpush1.bf16.msra.mxu0 %v2614
    %2660 = vmatprep.subr.bf16.mxu0 0
    %2661 = vmatpush1.bf16.msra.mxu0 %v2615
    %2662 = vmatprep.subr.bf16.mxu0 0
    %2663 = vmatpush1.bf16.msra.mxu0 %v2616
    %2664 = vmatprep.subr.bf16.mxu0 0
    %2665 = vmatpush1.bf16.msra.mxu0 %v2617
    %2666 = vmatprep.mubr.bf16.mxu0 %v2498
    %2667 = vmatmul.mubr.bf16.gmra.mrb[0].mxu0 %v2497
    %v2668 = vpop.f32.mrb[0].mxu0
    %v2669 = vadd.f32 %v2536, %v2668
    %v2670 = vpop.f32.mrb[0].mxu0
    %v2671 = vpop.f32.mrb[0].mxu0
    %v2672 = vpop.f32.mrb[0].mxu0
    %2673 = vdwg.mxu0
    %v2674 = vmax.f32 %v2669, 0.0
    %v2675 = vpack.c.bf16 %v2674, %v2674
    %v2676 = vld [vmem:[#allocation11] sm:$0xf]
    %v2677 = vld [vmem:[#allocation11 + $0x4] sm:$0xf]
    %v2678 = vld [vmem:[#allocation11 + $0x8] sm:$0xf]
    %v2679 = vld [vmem:[#allocation11 + $0xc] sm:$0xf]
    %v2680 = vld [vmem:[#allocation11 + $0x10] sm:$0xf]
    %v2681 = vld [vmem:[#allocation11 + $0x14] sm:$0xf]
    %v2682 = vld [vmem:[#allocation11 + $0x18] sm:$0xf]
    %v2683 = vld [vmem:[#allocation11 + $0x1c] sm:$0xf]
    %v2684 = vld [vmem:[#allocation11 + $0x20] sm:$0xf]
    %v2685 = vld [vmem:[#allocation11 + $0x24] sm:$0xf]
    %v2686 = vld [vmem:[#allocation11 + $0x28] sm:$0xf]
    %v2687 = vld [vmem:[#allocation11 + $0x2c] sm:$0xf]
    %v2688 = vld [vmem:[#allocation11 + $0x30] sm:$0xf]
    %v2689 = vld [vmem:[#allocation11 + $0x34] sm:$0xf]
    %v2690 = vld [vmem:[#allocation11 + $0x38] sm:$0xf]
    %v2691 = vld [vmem:[#allocation11 + $0x3c] sm:$0xf]
    %v2692 = vld [vmem:[#allocation13] sm:$0x1]
    %v2694 = vlaneseq
    %v2695 = vshrl.u32 %v2694, 7
    %v2696 = vsub.s32 0, %v2695
    %v2697 = vrot.slane %v2692, %v2696
    %v2715 = vunpack.c.l.b16 %v2676
    %v2716 = vunpack.c.l.b16 %v2677
    %v2717 = vunpack.c.l.b16 %v2678
    %v2718 = vunpack.c.l.b16 %v2679
    %v2719 = vunpack.c.l.b16 %v2680
    %v2720 = vunpack.c.l.b16 %v2681
    %v2721 = vunpack.c.l.b16 %v2682
    %v2722 = vunpack.c.l.b16 %v2683
    %v2723 = vunpack.c.l.b16 %v2684
    %v2724 = vunpack.c.l.b16 %v2685
    %v2725 = vunpack.c.l.b16 %v2686
    %v2726 = vunpack.c.l.b16 %v2687
    %v2727 = vunpack.c.l.b16 %v2688
    %v2728 = vunpack.c.l.b16 %v2689
    %v2729 = vunpack.c.l.b16 %v2690
    %v2730 = vunpack.c.l.b16 %v2691
    %v2731 = vpack.c.b16 %v2716, %v2715
    %v2732 = vpack.c.b16 %v2718, %v2717
    %v2733 = vpack.c.b16 %v2720, %v2719
    %v2734 = vpack.c.b16 %v2722, %v2721
    %v2735 = vpack.c.b16 %v2724, %v2723
    %v2736 = vpack.c.b16 %v2726, %v2725
    %v2737 = vpack.c.b16 %v2728, %v2727
    %v2738 = vpack.c.b16 %v2730, %v2729
    %2747 = vmatprep.subr.bf16.mxu0 0
    %2748 = vmatpush1.bf16.msra.mxu0 %v2731
    %2749 = vmatprep.subr.bf16.mxu0 0
    %2750 = vmatpush1.bf16.msra.mxu0 %v2732
    %2751 = vmatprep.subr.bf16.mxu0 0
    %2752 = vmatpush1.bf16.msra.mxu0 %v2733
    %2753 = vmatprep.subr.bf16.mxu0 0
    %2754 = vmatpush1.bf16.msra.mxu0 %v2734
    %2755 = vmatprep.subr.bf16.mxu0 0
    %2756 = vmatpush1.bf16.msra.mxu0 %v2735
    %2757 = vmatprep.subr.bf16.mxu0 0
    %2758 = vmatpush1.bf16.msra.mxu0 %v2736
    %2759 = vmatprep.subr.bf16.mxu0 0
    %2760 = vmatpush1.bf16.msra.mxu0 %v2737
    %2761 = vmatprep.subr.bf16.mxu0 0
    %2762 = vmatpush1.bf16.msra.mxu0 %v2738
    %2763 = vmatprep.subr.bf16.mxu0 0
    %2764 = vmatpush1.bf16.msra.mxu0 0
    %2765 = vmatprep.subr.bf16.mxu0 0
    %2766 = vmatpush1.bf16.msra.mxu0 0
    %2767 = vmatprep.subr.bf16.mxu0 0
    %2768 = vmatpush1.bf16.msra.mxu0 0
    %2769 = vmatprep.subr.bf16.mxu0 0
    %2770 = vmatpush1.bf16.msra.mxu0 0
    %2771 = vmatprep.subr.bf16.mxu0 0
    %2772 = vmatpush1.bf16.msra.mxu0 0
    %2773 = vmatprep.subr.bf16.mxu0 0
    %2774 = vmatpush1.bf16.msra.mxu0 0
    %2775 = vmatprep.subr.bf16.mxu0 0
    %2776 = vmatpush1.bf16.msra.mxu0 0
    %2777 = vmatprep.subr.bf16.mxu0 0
    %2778 = vmatpush1.bf16.msra.mxu0 0
    %2779 = vmatprep.mubr.bf16.mxu0 0
    %2780 = vmatmul.mubr.bf16.gmra.mrb[0].mxu0 %v2675
    %v2781 = vpop.f32.mrb[0].mxu0
    %v2782 = vadd.f32 %v2697, %v2781
    %v2783 = vpop.f32.mrb[0].mxu0
    %v2784 = vpop.f32.mrb[0].mxu0
    %v2785 = vpop.f32.mrb[0].mxu0
    %2786 = vdwg.mxu0
    %v2787 = vmax.f32 %v2782, 0.0
    %v2788 = vpack.c.bf16 %v2787, %v2787
    %v2789 = vld [vmem:[#allocation14] sm:$0xf]
    %v2790 = vld [vmem:[#allocation14 + $0x4] sm:$0xf]
    %v2791 = vld [vmem:[#allocation14 + $0x8] sm:$0xf]
    %v2792 = vld [vmem:[#allocation14 + $0xc] sm:$0xf]
    %v2793 = vld [vmem:[#allocation14 + $0x10] sm:$0xf]
    %v2794 = vld [vmem:[#allocation14 + $0x14] sm:$0xf]
    %v2795 = vld [vmem:[#allocation14 + $0x18] sm:$0xf]
    %v2796 = vld [vmem:[#allocation14 + $0x1c] sm:$0xf]
    %v2797 = vld [vmem:[#allocation14 + $0x20] sm:$0xf]
    %v2798 = vld [vmem:[#allocation14 + $0x24] sm:$0xf]
    %v2799 = vld [vmem:[#allocation14 + $0x28] sm:$0xf]
    %v2800 = vld [vmem:[#allocation14 + $0x2c] sm:$0xf]
    %v2801 = vld [vmem:[#allocation14 + $0x30] sm:$0xf]
    %v2802 = vld [vmem:[#allocation14 + $0x34] sm:$0xf]
    %v2803 = vld [vmem:[#allocation14 + $0x38] sm:$0xf]
    %v2804 = vld [vmem:[#allocation14 + $0x3c] sm:$0xf]
    %v2805 = vld [vmem:[#allocation16] sm:$0x1]
    %v2807 = vlaneseq
    %v2808 = vshrl.u32 %v2807, 7
    %v2809 = vsub.s32 0, %v2808
    %v2810 = vrot.slane %v2805, %v2809
    %v2828 = vunpack.c.l.b16 %v2789
    %v2829 = vunpack.c.l.b16 %v2790
    %v2830 = vunpack.c.l.b16 %v2791
    %v2831 = vunpack.c.l.b16 %v2792
    %v2832 = vunpack.c.l.b16 %v2793
    %v2833 = vunpack.c.l.b16 %v2794
    %v2834 = vunpack.c.l.b16 %v2795
    %v2835 = vunpack.c.l.b16 %v2796
    %v2836 = vunpack.c.l.b16 %v2797
    %v2837 = vunpack.c.l.b16 %v2798
    %v2838 = vunpack.c.l.b16 %v2799
    %v2839 = vunpack.c.l.b16 %v2800
    %v2840 = vunpack.c.l.b16 %v2801
    %v2841 = vunpack.c.l.b16 %v2802
    %v2842 = vunpack.c.l.b16 %v2803
    %v2843 = vunpack.c.l.b16 %v2804
    %v2844 = vpack.c.b16 %v2829, %v2828
    %v2845 = vpack.c.b16 %v2831, %v2830
    %v2846 = vpack.c.b16 %v2833, %v2832
    %v2847 = vpack.c.b16 %v2835, %v2834
    %v2848 = vpack.c.b16 %v2837, %v2836
    %v2849 = vpack.c.b16 %v2839, %v2838
    %v2850 = vpack.c.b16 %v2841, %v2840
    %v2851 = vpack.c.b16 %v2843, %v2842
    %2860 = vmatprep.subr.bf16.mxu0 0
    %2861 = vmatpush1.bf16.msra.mxu0 %v2844
    %2862 = vmatprep.subr.bf16.mxu0 0
    %2863 = vmatpush1.bf16.msra.mxu0 %v2845
    %2864 = vmatprep.subr.bf16.mxu0 0
    %2865 = vmatpush1.bf16.msra.mxu0 %v2846
    %2866 = vmatprep.subr.bf16.mxu0 0
    %2867 = vmatpush1.bf16.msra.mxu0 %v2847
    %2868 = vmatprep.subr.bf16.mxu0 0
    %2869 = vmatpush1.bf16.msra.mxu0 %v2848
    %2870 = vmatprep.subr.bf16.mxu0 0
    %2871 = vmatpush1.bf16.msra.mxu0 %v2849
    %2872 = vmatprep.subr.bf16.mxu0 0
    %2873 = vmatpush1.bf16.msra.mxu0 %v2850
    %2874 = vmatprep.subr.bf16.mxu0 0
    %2875 = vmatpush1.bf16.msra.mxu0 %v2851
    %2876 = vmatprep.subr.bf16.mxu0 0
    %2877 = vmatpush1.bf16.msra.mxu0 0
    %2878 = vmatprep.subr.bf16.mxu0 0
    %2879 = vmatpush1.bf16.msra.mxu0 0
    %2880 = vmatprep.subr.bf16.mxu0 0
    %2881 = vmatpush1.bf16.msra.mxu0 0
    %2882 = vmatprep.subr.bf16.mxu0 0
    %2883 = vmatpush1.bf16.msra.mxu0 0
    %2884 = vmatprep.subr.bf16.mxu0 0
    %2885 = vmatpush1.bf16.msra.mxu0 0
    %2886 = vmatprep.subr.bf16.mxu0 0
    %2887 = vmatpush1.bf16.msra.mxu0 0
    %2888 = vmatprep.subr.bf16.mxu0 0
    %2889 = vmatpush1.bf16.msra.mxu0 0
    %2890 = vmatprep.subr.bf16.mxu0 0
    %2891 = vmatpush1.bf16.msra.mxu0 0
    %2892 = vmatprep.mubr.bf16.mxu0 0
    %2893 = vmatmul.mubr.bf16.gmra.mrb[0].mxu0 %v2788
    %v2894 = vpop.f32.mrb[0].mxu0
    %v2895 = vadd.f32 %v2810, %v2894
    %v2896 = vpop.f32.mrb[0].mxu0
    %v2897 = vpop.f32.mrb[0].mxu0
    %v2898 = vpop.f32.mrb[0].mxu0
    %2899 = vdwg.mxu0
    %v2900 = vpack.c.bf16 %v2895, %v2895
    %v2903 = vunpack.c.l.s4 1966171168
    %v2904 = vunpack.c.0.s8 %v2903
    %v2905 = vlaneseq
    %v2906 = vshrl.u32 %v2905, 7
    %v2907 = vsub.s32 %v2904, %v2906
    %v2908 = vrot.slane %v2900, %v2907
    %v2909 = vcombine.high %v2908, %v2908
    %v2911 = vunpack.c.l.s4 1966171168
    %v2912 = vunpack.c.0.s8 %v2911
    %v2913 = vlaneseq
    %v2914 = vshrl.u32 %v2913, 7
    %v2915 = vsub.s32 %v2912, %v2914
    %v2916 = vrot.slane %v2908, %v2915
    %v2918 = vunpack.c.l.s4 1966171168
    %v2919 = vunpack.c.0.s8 %v2918
    %v2920 = vlaneseq
    %v2921 = vshrl.u32 %v2920, 7
    %v2922 = vsub.s32 %v2919, %v2921
    %v2923 = vrot.slane %v2909, %v2922
    %v2924 = vcombine.high %v2916, %v2916
    %v2925 = vcombine.high %v2923, %v2923
    %2930 = vst [vmem:[#allocation17] sm:$0x1] %v2916
    %2931 = vst [vmem:[#allocation17 + $0x1] sm:$0x1] %v2923
    %2932 = vst [vmem:[#allocation17 + $0x2] sm:$0x1] %v2924
    %2933 = vst [vmem:[#allocation17 + $0x3] sm:$0x1] %v2925
    // Predicated region
    $region74: #{tpu_custom_call.1} parent=1 // pred_check
      _
    $region75: #{tpu_custom_call.1} parent=1 // pred_check_branch
      %2935 = sbr.rel (0) target = $region77
    $region76: #{tpu_custom_call.1} parent=1 // pred_region
      %s2937 = ssub.s32 64, 16
      %2938 = vsyncadd [#allocation4], %s2937
      %s2939 = sshll.u32 [#allocation17], 4
      %s2940 = int_to_ptr.vmem [resolvable:$true] %s2939
      %2945 = dma.vmem_to_hbm [thread:$0]  %s2940, 16, %s9, [#allocation4], 16, 16, 1
    $region77: #{tpu_custom_call.1} parent=1 // pred_fallthru
      _
    // Predicated region
    $region78: #{tpu_custom_call.1} parent=1 // pred_check
      _
    $region79: #{tpu_custom_call.1} parent=1 // pred_check_branch
      %2947 = sbr.rel (0) target = $region81
    $region80: #{tpu_custom_call.1} parent=1 // pred_region
      %2948 = dma.done [#allocation4], 64
    $region81: #{tpu_custom_call.1} parent=1 // pred_fallthru
      _
    %2949 = vsyncpa [#allocation3], 1
    %2950 = vsyncpa [#allocation6], 1
    %2951 = vsyncpa [#allocation9], 1
    %2952 = vsyncpa [#allocation12], 1
    %2953 = vsyncpa [#allocation15], 1
    %2954 = vsyncpa [#allocation4], 1

</llo_original>
